<compile_context>
chip_gen: v7x
topology: tpu7x:2x2x1
jax: 0.10.0
libtpu: 0.0.40
codegen_flags: <defaults>
</compile_context>

<pallas_src>
import functools

import jax
import jax.numpy as jnp
from jax import lax
from jax.experimental import pallas as pl
from jax.experimental.pallas import tpu as pltpu


def _round_up(n, m):
    return ((n + m - 1) // m) * m


def _vmem_budget_bytes():
    """Generation-aware VMEM budget (also used as the Mosaic scoped-VMEM limit)."""
    try:
        cap = int(pltpu.get_tpu_info().vmem_capacity_bytes)
    except Exception:
        cap = 64 * 1024 * 1024          # conservative fallback (v7x per-core VMEM)
    cap = max(cap, 16 * 1024 * 1024)
    # ~25% headroom for Mosaic-internal scratch; never ask for more than 100 MiB.
    return max(min(int(cap * 3 // 4), 100 * 1024 * 1024), 12 * 1024 * 1024)


def _pick_c2_tile(C2p, C1p, budget_bytes):
    """Largest multiple-of-128 divisor of C2p whose (double-buffered bf16) weight
    slabs stay well inside the VMEM budget."""
    tc2 = 128
    for t in range(128, C2p + 1, 128):
        if C2p % t == 0 and 2 * (2 * C1p * t * 2) <= budget_bytes // 3:
            tc2 = t
    return tc2


def _pick_tile_rows(H, W, C1p, TC2, nC2, budget_bytes, act_bytes, B):
    """Largest divisor of H whose per-step footprint (weights + double-buffered
    blocks + scratch) fits the budget; keeps >=2 parallel grid points for v7x."""
    weight_bytes = (2 * (2 * C1p * TC2 * 2)          # w1 + w2 bf16, double-buffered
                    + 2 * 11 * TC2 * 4 + 2 * 2 * C1p * 4)   # wdw/b1/bdw/b2

    def block_bytes(th):
        n = th * W
        return (2 * n * C1p * act_bytes              # x body block (double-buffered)
                + 4 * W * C1p * act_bytes            # two 1-row halos (double-buffered)
                + 2 * n * C1p * act_bytes            # output block (double-buffered)
                + 2 * 2 * n * 128 * 4                # (N,1) edge masks, lane-padded
                + (n + 2 * W) * C1p * 2              # bf16 staging scratch
                + (n + 2 * W) * TC2 * 4              # hidden-slab scratch
                + (n * C1p * 4 if nC2 > 1 else 0))   # linear2 accumulator scratch

    divisors = [d for d in range(1, H + 1) if H % d == 0]
    fits = [d for d in divisors if weight_bytes + block_bytes(d) <= budget_bytes]
    th = max(fits) if fits else 1
    # v7x megacore: keep at least 2 parallel (batch, row-block) grid points.
    if B * (H // th) < 2:
        better = [d for d in fits if B * (H // d) >= 2]
        if better:
            th = max(better)
    return th


def _pad2(a, rows, cols):
    r, c = a.shape
    if r == rows and c == cols:
        return a
    return jnp.pad(a, ((0, rows - r), (0, cols - c)))


def prepare_params(params):
    """Pad / cast / reshape the module parameters ONCE (do this at init, not per call)."""
    w1, b1, wdw, bdw, w2, b2 = (params[k] for k in ("w1", "b1", "wdw", "bdw", "w2", "b2"))
    C1, C2 = w1.shape
    C1p, C2p = _round_up(C1, 128), _round_up(C2, 128)
    return {
        "_prepared": True, "C1": C1, "C2": C2, "C1p": C1p, "C2p": C2p,
        "w1": _pad2(w1, C1p, C2p).astype(jnp.bfloat16),
        "b1": _pad2(b1.reshape(1, C2), 1, C2p).astype(jnp.float32),
        "wdw": _pad2(wdw.reshape(9, C2), 9, C2p).astype(jnp.float32),   # row k = ky*3+kx
        "bdw": _pad2(bdw.reshape(1, C2), 1, C2p).astype(jnp.float32),
        "w2": _pad2(w2, C2p, C1p).astype(jnp.bfloat16),
        "b2": _pad2(b2.reshape(1, C1), 1, C1p).astype(jnp.float32),
    }


def _mlp_conv_kernel(x_ref, xt_ref, xb_ref,
                     w1_ref, b1_ref, wdw_ref, bdw_ref, w2_ref, b2_ref,
                     ml_ref, mr_ref,
                     o_ref,
                     xs_ref, h_ref, acc_ref,
                     *, TH, W, C1p, TC2, nR, nC2, approx_gelu):
    r = pl.program_id(1)
    c = pl.program_id(2)
    N = TH * W

    # ---- stage the bf16 input slab (+ 1-row halos) once per (batch, row-block) ----
    @pl.when(c == 0)
    def _stage():
        xs_ref[0:W] = xt_ref[...].reshape(W, C1p).astype(jnp.bfloat16)            # row above
        xs_ref[W:W + N] = x_ref[...].reshape(N, C1p).astype(jnp.bfloat16)         # body rows
        xs_ref[W + N:W + N + W] = xb_ref[...].reshape(W, C1p).astype(jnp.bfloat16)  # row below

    # ---- linear1: one fused (N+2W, C1p) x (C1p, TC2) MXU matmul, f32 accumulate ----
    h_all = jnp.dot(xs_ref[...], w1_ref[...],
                    preferred_element_type=jnp.float32) + b1_ref[...]
    h_body = h_all[W:W + N]                    # centre rows, used directly (no re-read)
    # drop1: identity (inference)

    # The depthwise conv zero-pads h itself, so halo rows outside the image must be
    # ZERO (not linear1(0) = b1): zero them after the matmul, then persist to scratch.
    top_ok = (r > 0).astype(jnp.float32)
    bot_ok = (r < nR - 1).astype(jnp.float32)
    h_ref[0:W] = h_all[0:W] * top_ok
    h_ref[W:W + N] = h_body
    h_ref[W + N:W + N + W] = h_all[W + N:W + N + W] * bot_ok

    # ---- depthwise 3x3, stride 1, padding 1, groups = C2 ----
    wdw = wdw_ref[...]                         # (9, TC2) f32, row k = ky*3 + kx
    bdw = bdw_ref[...]                         # (1, TC2) f32
    h_up = h_ref[0:N]                          # h[row-1, col]  (8-aligned offset 0)
    h_dn = h_ref[2 * W:2 * W + N]              # h[row+1, col]  (8-aligned offset 2W)

    # centre column taps (kx == 1)
    dw = h_up * wdw[1:2] + h_body * wdw[4:5] + h_dn * wdw[7:8] + bdw
    # left-neighbour taps (kx == 0): ky-sum, shift +1 pixel, zero the first column
    t = h_up * wdw[0:1] + h_body * wdw[3:4] + h_dn * wdw[6:7]
    dw = dw + pltpu.roll(t, shift=1, axis=0) * ml_ref[...]
    # right-neighbour taps (kx == 2): ky-sum, shift -1 pixel, zero the last column
    t = h_up * wdw[2:3] + h_body * wdw[5:6] + h_dn * wdw[8:9]
    dw = dw + pltpu.roll(t, shift=N - 1, axis=0) * mr_ref[...]

    # ---- residual + GELU (f32 elementwise; tanh GELU uses the EUP slot) ----
    y = jax.nn.gelu(h_body + dw, approximate=approx_gelu)

    # ---- linear2 partial for this C2 slab (bf16 MXU operands, f32 accumulation) ----
    part = jnp.dot(y.astype(jnp.bfloat16), w2_ref[...],
                   preferred_element_type=jnp.float32)
    # drop2: identity (inference)

    if nC2 == 1:
        o_ref[...] = (part + b2_ref[...]).reshape(1, TH, W, C1p).astype(o_ref.dtype)
    else:
        @pl.when(c == 0)
        def _init():
            acc_ref[...] = jnp.zeros((N, C1p), jnp.float32) + b2_ref[...]

        acc_ref[...] += part

        @pl.when(c == nC2 - 1)
        def _finalize():
            o_ref[...] = acc_ref[...].reshape(1, TH, W, C1p).astype(o_ref.dtype)


def transformer_mlp_with_conv_nhwc(x_nhwc, params, *, tile_rows=None, c2_tile=None,
                                   approx_gelu=True):
    """x_nhwc: (B, H, W, C1), float32 or bfloat16. Returns (B, H, W, C1) in x's dtype."""
    if not params.get("_prepared", False):
        params = prepare_params(params)
    B, H, W, C1 = x_nhwc.shape
    C1p, C2p = params["C1p"], params["C2p"]
    assert C1 == params["C1"], "channel mismatch between x and params"
    assert W % 8 == 0, "W must be a multiple of 8 (sublane-aligned row slices)"

    budget = _vmem_budget_bytes()
    TC2 = c2_tile if c2_tile is not None else _pick_c2_tile(C2p, C1p, budget)
    assert C2p % TC2 == 0 and TC2 % 128 == 0
    nC2 = C2p // TC2

    act_bytes = jnp.dtype(x_nhwc.dtype).itemsize
    TH = tile_rows if tile_rows is not None else _pick_tile_rows(
        H, W, C1p, TC2, nC2, budget, act_bytes, B)
    assert H % TH == 0, f"tile_rows={TH} must divide H={H}"
    nR = H // TH
    N = TH * W

    # Lane-dense channel pad only when needed (production channels are usually
    # already multiples of 128, so this and the final slice are skipped).
    xp = x_nhwc if C1 == C1p else jnp.pad(
        x_nhwc, ((0, 0), (0, 0), (0, 0), (0, C1p - C1)))

    # Precomputed 0/1 column-edge masks, (N, 1) f32 (constant index_map -> fetched once).
    col = jnp.tile(jnp.arange(W, dtype=jnp.int32), TH)
    mleft = (col != 0).astype(jnp.float32).reshape(N, 1)
    mright = (col != W - 1).astype(jnp.float32).reshape(N, 1)

    kernel = functools.partial(_mlp_conv_kernel, TH=TH, W=W, C1p=C1p, TC2=TC2,
                               nR=nR, nC2=nC2, approx_gelu=approx_gelu)

    x_spec = pl.BlockSpec((1, TH, W, C1p), lambda b, r, c: (b, r, 0, 0))
    # Halo rows fetched straight from x via clamped 1-row index maps (no wrapper halo tensor).
    top_spec = pl.BlockSpec((1, 1, W, C1p),
                            lambda b, r, c: (b, jnp.maximum(r * TH - 1, 0), 0, 0))
    bot_spec = pl.BlockSpec((1, 1, W, C1p),
                            lambda b, r, c: (b, jnp.minimum(r * TH + TH, H - 1), 0, 0))

    out_p = pl.pallas_call(
        kernel,
        out_shape=jax.ShapeDtypeStruct((B, H, W, C1p), x_nhwc.dtype),
        grid_spec=pltpu.PrefetchScalarGridSpec(
            num_scalar_prefetch=0,
            grid=(B, nR, nC2),
            in_specs=[
                x_spec,
                top_spec,
                bot_spec,
                pl.BlockSpec((C1p, TC2), lambda b, r, c: (0, c)),   # w1 slab
                pl.BlockSpec((1, TC2), lambda b, r, c: (0, c)),     # b1 slab
                pl.BlockSpec((9, TC2), lambda b, r, c: (0, c)),     # dw 3x3 taps
                pl.BlockSpec((1, TC2), lambda b, r, c: (0, c)),     # dw bias
                pl.BlockSpec((TC2, C1p), lambda b, r, c: (c, 0)),   # w2 slab
                pl.BlockSpec((1, C1p), lambda b, r, c: (0, 0)),     # b2
                pl.BlockSpec((N, 1), lambda b, r, c: (0, 0)),       # not-first-column mask
                pl.BlockSpec((N, 1), lambda b, r, c: (0, 0)),       # not-last-column mask
            ],
            out_specs=pl.BlockSpec((1, TH, W, C1p), lambda b, r, c: (b, r, 0, 0)),
            scratch_shapes=[
                pltpu.VMEM((N + 2 * W, C1p), jnp.bfloat16),          # staged bf16 x (+halos)
                pltpu.VMEM((N + 2 * W, TC2), jnp.float32),           # halo-padded hidden slab
                pltpu.VMEM((N, C1p) if nC2 > 1 else (8, 128), jnp.float32),  # linear2 acc
            ]),
        compiler_params=pltpu.CompilerParams(
            dimension_semantics=("parallel", "parallel", "arbitrary"),
            vmem_limit_bytes=budget),
    )(xp, xp, xp, params["w1"], params["b1"], params["wdw"], params["bdw"],
      params["w2"], params["b2"], mleft, mright)

    return out_p if C1 == C1p else out_p[..., :C1]


def transformer_mlp_with_conv(x_nchw, params, *, tile_rows=None, c2_tile=None,
                              approx_gelu=True):
    """NCHW convenience wrapper (PyTorch layout). Prefer the NHWC entry point upstream
    to avoid the two full-tensor transposes."""
    x = jnp.transpose(x_nchw, (0, 2, 3, 1))
    out = transformer_mlp_with_conv_nhwc(x, params, tile_rows=tile_rows,
                                         c2_tile=c2_tile, approx_gelu=approx_gelu)
    return jnp.transpose(out, (0, 3, 1, 2))


def _reference(x_nchw, params, approx_gelu):
    """Pure-JAX f32 reference mirroring the PyTorch forward (eval mode)."""
    w1, b1, wdw, bdw, w2, b2 = (params[k] for k in ("w1", "b1", "wdw", "bdw", "w2", "b2"))
    x = jnp.transpose(x_nchw, (0, 2, 3, 1))                        # NHWC
    h = jnp.einsum("bhwc,cd->bhwd", x, w1) + b1.reshape(1, 1, 1, -1)
    C2 = w1.shape[1]
    dw = lax.conv_general_dilated(
        h, wdw.reshape(3, 3, 1, C2),
        window_strides=(1, 1), padding=((1, 1), (1, 1)),
        dimension_numbers=("NHWC", "HWIO", "NHWC"),
        feature_group_count=C2) + bdw.reshape(1, 1, 1, -1)
    y = jax.nn.gelu(h + dw, approximate=approx_gelu)
    out = jnp.einsum("bhwd,dc->bhwc", y, w2) + b2.reshape(1, 1, 1, -1)
    return jnp.transpose(out, (0, 3, 1, 2))


if __name__ == "__main__":
    # Small shapes: batch=2, channels=4, expansion=2 -> hidden=8, spatial 16x16.
    B, C1, H, W = 2, 4, 16, 16
    expansion = 2
    C2 = C1 * expansion
    # drop = 0.0 -> dropout is identity (eval mode)

    key = jax.random.PRNGKey(0)
    ks = jax.random.split(key, 7)
    x = jax.random.normal(ks[0], (B, C1, H, W), jnp.float32)

    params = {
        # linear1: Conv2d(C1, C2, 1) weight (C2, C1, 1, 1) -> stored as (in, out)
        "w1": jax.random.normal(ks[1], (C1, C2), jnp.float32) * 0.1,
        "b1": jax.random.normal(ks[2], (1, C2), jnp.float32) * 0.1,
        # dwc: Conv2d(C2, C2, 3, padding=1, groups=C2) weight (C2, 1, 3, 3) -> (3, 3, C2)
        "wdw": jax.random.normal(ks[3], (3, 3, C2), jnp.float32) * 0.1,
        "bdw": jax.random.normal(ks[4], (1, C2), jnp.float32) * 0.1,
        # linear2: Conv2d(C2, C1, 1) weight (C1, C2, 1, 1) -> stored as (in, out)
        "w2": jax.random.normal(ks[5], (C2, C1), jnp.float32) * 0.1,
        "b2": jax.random.normal(ks[6], (1, C1), jnp.float32) * 0.1,
    }

    prepared = prepare_params(params)   # pad / cast weights ONCE

    # tile_rows=8 -> two row-blocks per image, exercising the cross-block halo path.
    approx_gelu = True                   # tanh GELU (EUP); set False for erf bit-parity
    out = transformer_mlp_with_conv(x, prepared, tile_rows=8, approx_gelu=approx_gelu)
    out = jax.block_until_ready(out)

    ref = _reference(x, params, approx_gelu)
    assert out.shape == (B, C1, H, W)
    # bf16 MXU operands (f32 accumulation) -> slightly looser tolerance vs the f32 reference.
    assert jnp.allclose(out, ref, atol=2e-2, rtol=2e-2), "mismatch vs reference"

    print("KERNEL_OK")
</pallas_src>

<mosaic_0001>
module attributes {stable_mosaic.version = 11 : i64} {
  func.func @_mlp_conv_kernel(%arg0: i32, %arg1: i32, %arg2: i32, %arg3: memref<1x8x16x128xf32, #tpu.memory_space<vmem>>, %arg4: memref<1x1x16x128xf32, #tpu.memory_space<vmem>>, %arg5: memref<1x1x16x128xf32, #tpu.memory_space<vmem>>, %arg6: memref<128x128xbf16, #tpu.memory_space<vmem>>, %arg7: memref<1x128xf32, #tpu.memory_space<vmem>>, %arg8: memref<9x128xf32, #tpu.memory_space<vmem>>, %arg9: memref<1x128xf32, #tpu.memory_space<vmem>>, %arg10: memref<128x128xbf16, #tpu.memory_space<vmem>>, %arg11: memref<1x128xf32, #tpu.memory_space<vmem>>, %arg12: memref<128x1xf32, #tpu.memory_space<vmem>>, %arg13: memref<128x1xf32, #tpu.memory_space<vmem>>, %arg14: memref<1x8x16x128xf32, #tpu.memory_space<vmem>>, %arg15: memref<160x128xbf16, #tpu.memory_space<vmem>>, %arg16: memref<160x128xf32, #tpu.memory_space<vmem>>, %arg17: memref<8x128xf32, #tpu.memory_space<vmem>>) attributes {dimension_semantics = [#tpu.dimension_semantics<parallel>, #tpu.dimension_semantics<parallel>, #tpu.dimension_semantics<arbitrary>], iteration_bounds = array<i64: 2, 2, 1>, scalar_prefetch = 0 : i64, scratch_operands = 3 : i64, tpu.core_type = #tpu.core_type<tc>, window_params = [{transform_indices = @transform_0, window_bounds = array<i64: 1, 8, 16, 128>}, {transform_indices = @transform_1, window_bounds = array<i64: 1, 1, 16, 128>}, {transform_indices = @transform_2, window_bounds = array<i64: 1, 1, 16, 128>}, {transform_indices = @transform_3, window_bounds = array<i64: 128, 128>}, {transform_indices = @transform_4, window_bounds = array<i64: 1, 128>}, {transform_indices = @transform_5, window_bounds = array<i64: 9, 128>}, {transform_indices = @transform_6, window_bounds = array<i64: 1, 128>}, {transform_indices = @transform_7, window_bounds = array<i64: 128, 128>}, {pipeline_mode = #tpu.pipeline_mode<synchronous>, transform_indices = @transform_8, window_bounds = array<i64: 1, 128>}, {pipeline_mode = #tpu.pipeline_mode<synchronous>, transform_indices = @transform_9, window_bounds = array<i64: 128, 1>}, {pipeline_mode = #tpu.pipeline_mode<synchronous>, transform_indices = @transform_10, window_bounds = array<i64: 128, 1>}, {transform_indices = @transform_11, window_bounds = array<i64: 1, 8, 16, 128>}]} {
    %c0_i32 = arith.constant 0 : i32
    %0 = arith.cmpi eq, %arg2, %c0_i32 : i32
    %1 = arith.extui %0 : i1 to i32
    %c0_i32_0 = arith.constant 0 : i32
    %2 = arith.cmpi ne, %1, %c0_i32_0 : i32
    scf.if %2 {
      %c0_36 = arith.constant 0 : index
      %c0_37 = arith.constant 0 : index
      %c0_38 = arith.constant 0 : index
      %c0_39 = arith.constant 0 : index
      %96 = vector.load %arg4[%c0_36, %c0_37, %c0_38, %c0_39] : memref<1x1x16x128xf32, #tpu.memory_space<vmem>>, vector<1x1x16x128xf32>
      %97 = vector.shape_cast %96 : vector<1x1x16x128xf32> to vector<16x128xf32>
      %98 = arith.truncf %97 : vector<16x128xf32> to vector<16x128xbf16>
      %c0_40 = arith.constant 0 : index
      %c0_41 = arith.constant 0 : index
      %99 = vector.load %arg15[%c0_40, %c0_41] : memref<160x128xbf16, #tpu.memory_space<vmem>>, vector<16x128xbf16>
      tpu.vector_store %arg15[%c0_40, %c0_41], %98 {strides = array<i32>} : memref<160x128xbf16, #tpu.memory_space<vmem>>, vector<16x128xbf16>,
      %c0_42 = arith.constant 0 : index
      %c0_43 = arith.constant 0 : index
      %c0_44 = arith.constant 0 : index
      %c0_45 = arith.constant 0 : index
      %100 = vector.load %arg3[%c0_42, %c0_43, %c0_44, %c0_45] : memref<1x8x16x128xf32, #tpu.memory_space<vmem>>, vector<1x8x16x128xf32>
      %101 = vector.shape_cast %100 : vector<1x8x16x128xf32> to vector<128x128xf32>
      %102 = arith.truncf %101 : vector<128x128xf32> to vector<128x128xbf16>
      %c16_46 = arith.constant 16 : index
      %c0_47 = arith.constant 0 : index
      %103 = vector.load %arg15[%c16_46, %c0_47] : memref<160x128xbf16, #tpu.memory_space<vmem>>, vector<128x128xbf16>
      tpu.vector_store %arg15[%c16_46, %c0_47], %102 {strides = array<i32>} : memref<160x128xbf16, #tpu.memory_space<vmem>>, vector<128x128xbf16>,
      %c0_48 = arith.constant 0 : index
      %c0_49 = arith.constant 0 : index
      %c0_50 = arith.constant 0 : index
      %c0_51 = arith.constant 0 : index
      %104 = vector.load %arg5[%c0_48, %c0_49, %c0_50, %c0_51] : memref<1x1x16x128xf32, #tpu.memory_space<vmem>>, vector<1x1x16x128xf32>
      %105 = vector.shape_cast %104 : vector<1x1x16x128xf32> to vector<16x128xf32>
      %106 = arith.truncf %105 : vector<16x128xf32> to vector<16x128xbf16>
      %c144_52 = arith.constant 144 : index
      %c0_53 = arith.constant 0 : index
      %107 = vector.load %arg15[%c144_52, %c0_53] : memref<160x128xbf16, #tpu.memory_space<vmem>>, vector<16x128xbf16>
      tpu.vector_store %arg15[%c144_52, %c0_53], %106 {strides = array<i32>} : memref<160x128xbf16, #tpu.memory_space<vmem>>, vector<16x128xbf16>,
    } else {
    }
    %c0 = arith.constant 0 : index
    %c0_1 = arith.constant 0 : index
    %3 = vector.load %arg15[%c0, %c0_1] : memref<160x128xbf16, #tpu.memory_space<vmem>>, vector<160x128xbf16>
    %c0_2 = arith.constant 0 : index
    %c0_3 = arith.constant 0 : index
    %4 = vector.load %arg6[%c0_2, %c0_3] : memref<128x128xbf16, #tpu.memory_space<vmem>>, vector<128x128xbf16>
    %cst = arith.constant dense<0.000000e+00> : vector<160x128xf32>
    %5 = tpu.matmul %3, %4, %cst {dimension_numbers = #tpu.dot_dimension_numbers<[1], [0], [0], [1], [0, 0, 1, 1], [], []>} : vector<160x128xbf16>, vector<128x128xbf16>, vector<160x128xf32> -> vector<160x128xf32>
    %c0_4 = arith.constant 0 : index
    %c0_5 = arith.constant 0 : index
    %6 = vector.load %arg7[%c0_4, %c0_5] : memref<1x128xf32, #tpu.memory_space<vmem>>, vector<1x128xf32>
    %7 = vector.broadcast %6 : vector<1x128xf32> to vector<160x128xf32>
    %8 = arith.addf %5, %7 : vector<160x128xf32>
    %9 = vector.extract_strided_slice %8 {offsets = [16, 0], sizes = [128, 128], strides = [1, 1]} : vector<160x128xf32> to vector<128x128xf32>
    %c0_i32_6 = arith.constant 0 : i32
    %10 = arith.cmpi sgt, %arg1, %c0_i32_6 : i32
    %11 = arith.extui %10 : i1 to i32
    %12 = arith.sitofp %11 : i32 to f32
    %c1_i32 = arith.constant 1 : i32
    %13 = arith.cmpi slt, %arg1, %c1_i32 : i32
    %14 = arith.extui %13 : i1 to i32
    %15 = arith.sitofp %14 : i32 to f32
    %16 = vector.extract_strided_slice %8 {offsets = [0, 0], sizes = [16, 128], strides = [1, 1]} : vector<160x128xf32> to vector<16x128xf32>
    %17 = vector.broadcast %12 : f32 to vector<16x128xf32>
    %18 = arith.mulf %16, %17 : vector<16x128xf32>
    %c0_7 = arith.constant 0 : index
    %c0_8 = arith.constant 0 : index
    %19 = vector.load %arg16[%c0_7, %c0_8] : memref<160x128xf32, #tpu.memory_space<vmem>>, vector<16x128xf32>
    tpu.vector_store %arg16[%c0_7, %c0_8], %18 {strides = array<i32>} : memref<160x128xf32, #tpu.memory_space<vmem>>, vector<16x128xf32>,
    %c16 = arith.constant 16 : index
    %c0_9 = arith.constant 0 : index
    %20 = vector.load %arg16[%c16, %c0_9] : memref<160x128xf32, #tpu.memory_space<vmem>>, vector<128x128xf32>
    tpu.vector_store %arg16[%c16, %c0_9], %9 {strides = array<i32>} : memref<160x128xf32, #tpu.memory_space<vmem>>, vector<128x128xf32>,
    %21 = vector.extract_strided_slice %8 {offsets = [144, 0], sizes = [16, 128], strides = [1, 1]} : vector<160x128xf32> to vector<16x128xf32>
    %22 = vector.broadcast %15 : f32 to vector<16x128xf32>
    %23 = arith.mulf %21, %22 : vector<16x128xf32>
    %c144 = arith.constant 144 : index
    %c0_10 = arith.constant 0 : index
    %24 = vector.load %arg16[%c144, %c0_10] : memref<160x128xf32, #tpu.memory_space<vmem>>, vector<16x128xf32>
    tpu.vector_store %arg16[%c144, %c0_10], %23 {strides = array<i32>} : memref<160x128xf32, #tpu.memory_space<vmem>>, vector<16x128xf32>,
    %c0_11 = arith.constant 0 : index
    %c0_12 = arith.constant 0 : index
    %25 = vector.load %arg8[%c0_11, %c0_12] : memref<9x128xf32, #tpu.memory_space<vmem>>, vector<9x128xf32>
    %c0_13 = arith.constant 0 : index
    %c0_14 = arith.constant 0 : index
    %26 = vector.load %arg9[%c0_13, %c0_14] : memref<1x128xf32, #tpu.memory_space<vmem>>, vector<1x128xf32>
    %c0_15 = arith.constant 0 : index
    %c0_16 = arith.constant 0 : index
    %27 = vector.load %arg16[%c0_15, %c0_16] : memref<160x128xf32, #tpu.memory_space<vmem>>, vector<128x128xf32>
    %c32 = arith.constant 32 : index
    %c0_17 = arith.constant 0 : index
    %28 = vector.load %arg16[%c32, %c0_17] : memref<160x128xf32, #tpu.memory_space<vmem>>, vector<128x128xf32>
    %29 = vector.extract_strided_slice %25 {offsets = [1, 0], sizes = [1, 128], strides = [1, 1]} : vector<9x128xf32> to vector<1x128xf32>
    %30 = vector.broadcast %29 : vector<1x128xf32> to vector<128x128xf32>
    %31 = arith.mulf %27, %30 : vector<128x128xf32>
    %32 = vector.extract_strided_slice %25 {offsets = [4, 0], sizes = [1, 128], strides = [1, 1]} : vector<9x128xf32> to vector<1x128xf32>
    %33 = vector.broadcast %32 : vector<1x128xf32> to vector<128x128xf32>
    %34 = arith.mulf %9, %33 : vector<128x128xf32>
    %35 = arith.addf %31, %34 : vector<128x128xf32>
    %36 = vector.extract_strided_slice %25 {offsets = [7, 0], sizes = [1, 128], strides = [1, 1]} : vector<9x128xf32> to vector<1x128xf32>
    %37 = vector.broadcast %36 : vector<1x128xf32> to vector<128x128xf32>
    %38 = arith.mulf %28, %37 : vector<128x128xf32>
    %39 = arith.addf %35, %38 : vector<128x128xf32>
    %40 = vector.broadcast %26 : vector<1x128xf32> to vector<128x128xf32>
    %41 = arith.addf %39, %40 : vector<128x128xf32>
    %42 = vector.extract_strided_slice %25 {offsets = [0, 0], sizes = [1, 128], strides = [1, 1]} : vector<9x128xf32> to vector<1x128xf32>
    %43 = vector.broadcast %42 : vector<1x128xf32> to vector<128x128xf32>
    %44 = arith.mulf %27, %43 : vector<128x128xf32>
    %45 = vector.extract_strided_slice %25 {offsets = [3, 0], sizes = [1, 128], strides = [1, 1]} : vector<9x128xf32> to vector<1x128xf32>
    %46 = vector.broadcast %45 : vector<1x128xf32> to vector<128x128xf32>
    %47 = arith.mulf %9, %46 : vector<128x128xf32>
    %48 = arith.addf %44, %47 : vector<128x128xf32>
    %49 = vector.extract_strided_slice %25 {offsets = [6, 0], sizes = [1, 128], strides = [1, 1]} : vector<9x128xf32> to vector<1x128xf32>
    %50 = vector.broadcast %49 : vector<1x128xf32> to vector<128x128xf32>
    %51 = arith.mulf %28, %50 : vector<128x128xf32>
    %52 = arith.addf %48, %51 : vector<128x128xf32>
    %c1_i32_18 = arith.constant 1 : i32
    %53 = tpu.dynamic_rotate %52 by %c1_i32_18 dim 0 : vector<128x128xf32>, i32 -> vector<128x128xf32>
    %c0_19 = arith.constant 0 : index
    %c0_20 = arith.constant 0 : index
    %54 = vector.load %arg12[%c0_19, %c0_20] : memref<128x1xf32, #tpu.memory_space<vmem>>, vector<128x1xf32>
    %55 = vector.broadcast %54 : vector<128x1xf32> to vector<128x128xf32>
    %56 = arith.mulf %53, %55 : vector<128x128xf32>
    %57 = arith.addf %41, %56 : vector<128x128xf32>
    %58 = vector.extract_strided_slice %25 {offsets = [2, 0], sizes = [1, 128], strides = [1, 1]} : vector<9x128xf32> to vector<1x128xf32>
    %59 = vector.broadcast %58 : vector<1x128xf32> to vector<128x128xf32>
    %60 = arith.mulf %27, %59 : vector<128x128xf32>
    %61 = vector.extract_strided_slice %25 {offsets = [5, 0], sizes = [1, 128], strides = [1, 1]} : vector<9x128xf32> to vector<1x128xf32>
    %62 = vector.broadcast %61 : vector<1x128xf32> to vector<128x128xf32>
    %63 = arith.mulf %9, %62 : vector<128x128xf32>
    %64 = arith.addf %60, %63 : vector<128x128xf32>
    %65 = vector.extract_strided_slice %25 {offsets = [8, 0], sizes = [1, 128], strides = [1, 1]} : vector<9x128xf32> to vector<1x128xf32>
    %66 = vector.broadcast %65 : vector<1x128xf32> to vector<128x128xf32>
    %67 = arith.mulf %28, %66 : vector<128x128xf32>
    %68 = arith.addf %64, %67 : vector<128x128xf32>
    %c127_i32 = arith.constant 127 : i32
    %69 = tpu.dynamic_rotate %68 by %c127_i32 dim 0 : vector<128x128xf32>, i32 -> vector<128x128xf32>
    %c0_21 = arith.constant 0 : index
    %c0_22 = arith.constant 0 : index
    %70 = vector.load %arg13[%c0_21, %c0_22] : memref<128x1xf32, #tpu.memory_space<vmem>>, vector<128x1xf32>
    %71 = vector.broadcast %70 : vector<128x1xf32> to vector<128x128xf32>
    %72 = arith.mulf %69, %71 : vector<128x128xf32>
    %73 = arith.addf %57, %72 : vector<128x128xf32>
    %74 = arith.addf %9, %73 : vector<128x128xf32>
    %75 = arith.mulf %74, %74 : vector<128x128xf32>
    %76 = arith.mulf %74, %75 : vector<128x128xf32>
    %cst_23 = arith.constant 4.471500e-02 : f32
    %77 = vector.broadcast %cst_23 : f32 to vector<128x128xf32>
    %78 = arith.mulf %77, %76 : vector<128x128xf32>
    %79 = arith.addf %74, %78 : vector<128x128xf32>
    %cst_24 = arith.constant 0.797884583 : f32
    %80 = vector.broadcast %cst_24 : f32 to vector<128x128xf32>
    %81 = arith.mulf %80, %79 : vector<128x128xf32>
    %82 = math.tanh %81 : vector<128x128xf32>
    %cst_25 = arith.constant 1.000000e+00 : f32
    %83 = vector.broadcast %cst_25 : f32 to vector<128x128xf32>
    %84 = arith.addf %83, %82 : vector<128x128xf32>
    %cst_26 = arith.constant 5.000000e-01 : f32
    %85 = vector.broadcast %cst_26 : f32 to vector<128x128xf32>
    %86 = arith.mulf %85, %84 : vector<128x128xf32>
    %87 = arith.mulf %74, %86 : vector<128x128xf32>
    %88 = arith.truncf %87 : vector<128x128xf32> to vector<128x128xbf16>
    %c0_27 = arith.constant 0 : index
    %c0_28 = arith.constant 0 : index
    %89 = vector.load %arg10[%c0_27, %c0_28] : memref<128x128xbf16, #tpu.memory_space<vmem>>, vector<128x128xbf16>
    %cst_29 = arith.constant dense<0.000000e+00> : vector<128x128xf32>
    %90 = tpu.matmul %88, %89, %cst_29 {dimension_numbers = #tpu.dot_dimension_numbers<[1], [0], [0], [1], [0, 0, 1, 1], [], []>} : vector<128x128xbf16>, vector<128x128xbf16>, vector<128x128xf32> -> vector<128x128xf32>
    %c0_30 = arith.constant 0 : index
    %c0_31 = arith.constant 0 : index
    %91 = vector.load %arg11[%c0_30, %c0_31] : memref<1x128xf32, #tpu.memory_space<vmem>>, vector<1x128xf32>
    %92 = vector.broadcast %91 : vector<1x128xf32> to vector<128x128xf32>
    %93 = arith.addf %90, %92 : vector<128x128xf32>
    %94 = vector.shape_cast %93 : vector<128x128xf32> to vector<1x8x16x128xf32>
    %c0_32 = arith.constant 0 : index
    %c0_33 = arith.constant 0 : index
    %c0_34 = arith.constant 0 : index
    %c0_35 = arith.constant 0 : index
    %95 = vector.load %arg14[%c0_32, %c0_33, %c0_34, %c0_35] : memref<1x8x16x128xf32, #tpu.memory_space<vmem>>, vector<1x8x16x128xf32>
    tpu.vector_store %arg14[%c0_32, %c0_33, %c0_34, %c0_35], %94 {strides = array<i32>} : memref<1x8x16x128xf32, #tpu.memory_space<vmem>>, vector<1x8x16x128xf32>,
    return
  }
  func.func @transform_0(%arg0: i32, %arg1: i32, %arg2: i32) -> (i32, i32, i32, i32) {
    %c0_i32 = arith.constant 0 : i32
    %c0_i32_0 = arith.constant 0 : i32
    %c0_i32_1 = arith.constant 0 : i32
    return %arg0, %arg1, %c0_i32, %c0_i32_0 : i32, i32, i32, i32
  }
  func.func @transform_1(%arg0: i32, %arg1: i32, %arg2: i32) -> (i32, i32, i32, i32) {
    %c8_i32 = arith.constant 8 : i32
    %0 = arith.muli %arg1, %c8_i32 : i32
    %c1_i32 = arith.constant 1 : i32
    %1 = arith.subi %0, %c1_i32 : i32
    %c0_i32 = arith.constant 0 : i32
    %2 = arith.maxsi %1, %c0_i32 : i32
    %c0_i32_0 = arith.constant 0 : i32
    %c0_i32_1 = arith.constant 0 : i32
    %c0_i32_2 = arith.constant 0 : i32
    return %arg0, %2, %c0_i32_0, %c0_i32_1 : i32, i32, i32, i32
  }
  func.func @transform_2(%arg0: i32, %arg1: i32, %arg2: i32) -> (i32, i32, i32, i32) {
    %c8_i32 = arith.constant 8 : i32
    %0 = arith.muli %arg1, %c8_i32 : i32
    %c8_i32_0 = arith.constant 8 : i32
    %1 = arith.addi %0, %c8_i32_0 : i32
    %c15_i32 = arith.constant 15 : i32
    %2 = arith.minsi %1, %c15_i32 : i32
    %c0_i32 = arith.constant 0 : i32
    %c0_i32_1 = arith.constant 0 : i32
    %c0_i32_2 = arith.constant 0 : i32
    return %arg0, %2, %c0_i32, %c0_i32_1 : i32, i32, i32, i32
  }
  func.func @transform_3(%arg0: i32, %arg1: i32, %arg2: i32) -> (i32, i32) {
    %c0_i32 = arith.constant 0 : i32
    %c0_i32_0 = arith.constant 0 : i32
    return %c0_i32, %arg2 : i32, i32
  }
  func.func @transform_4(%arg0: i32, %arg1: i32, %arg2: i32) -> (i32, i32) {
    %c0_i32 = arith.constant 0 : i32
    %c0_i32_0 = arith.constant 0 : i32
    return %c0_i32, %arg2 : i32, i32
  }
  func.func @transform_5(%arg0: i32, %arg1: i32, %arg2: i32) -> (i32, i32) {
    %c0_i32 = arith.constant 0 : i32
    %c0_i32_0 = arith.constant 0 : i32
    return %c0_i32, %arg2 : i32, i32
  }
  func.func @transform_6(%arg0: i32, %arg1: i32, %arg2: i32) -> (i32, i32) {
    %c0_i32 = arith.constant 0 : i32
    %c0_i32_0 = arith.constant 0 : i32
    return %c0_i32, %arg2 : i32, i32
  }
  func.func @transform_7(%arg0: i32, %arg1: i32, %arg2: i32) -> (i32, i32) {
    %c0_i32 = arith.constant 0 : i32
    %c0_i32_0 = arith.constant 0 : i32
    return %arg2, %c0_i32 : i32, i32
  }
  func.func @transform_8(%arg0: i32, %arg1: i32, %arg2: i32) -> (i32, i32) {
    %c0_i32 = arith.constant 0 : i32
    %c0_i32_0 = arith.constant 0 : i32
    %c0_i32_1 = arith.constant 0 : i32
    return %c0_i32, %c0_i32_0 : i32, i32
  }
  func.func @transform_9(%arg0: i32, %arg1: i32, %arg2: i32) -> (i32, i32) {
    %c0_i32 = arith.constant 0 : i32
    %c0_i32_0 = arith.constant 0 : i32
    %c0_i32_1 = arith.constant 0 : i32
    return %c0_i32, %c0_i32_0 : i32, i32
  }
  func.func @transform_10(%arg0: i32, %arg1: i32, %arg2: i32) -> (i32, i32) {
    %c0_i32 = arith.constant 0 : i32
    %c0_i32_0 = arith.constant 0 : i32
    %c0_i32_1 = arith.constant 0 : i32
    return %c0_i32, %c0_i32_0 : i32, i32
  }
  func.func @transform_11(%arg0: i32, %arg1: i32, %arg2: i32) -> (i32, i32, i32, i32) {
    %c0_i32 = arith.constant 0 : i32
    %c0_i32_0 = arith.constant 0 : i32
    %c0_i32_1 = arith.constant 0 : i32
    return %arg0, %arg1, %c0_i32, %c0_i32_0 : i32, i32, i32, i32
  }
}

</mosaic_0001>

<llo_original>
// kernel: tpu_custom_call.1
$region0: #{tpu_custom_call.1}
  #allocation0 [shape = 'u32[]', space=smem, size = 0x4, offset = 0x4, fixed_abs, tag = 'smem constant byte address 0x4 - core index']
  #allocation1 [shape = 'u32[144,128]{1,0:T(1,128)}', space=vmem, size = 0x12000, scoped, tag = 'internal scratch']
  #allocation2 [shape = 'bf16[160,128]{1,0:T(16,128)(2,1)}', space=vmem, size = 0xa000, scoped, tag = 'scratch operand']
  #allocation3 [shape = 'f32[160,128]{1,0:T(8,128)}', space=vmem, size = 0x14000, scoped, tag = 'scratch operand']
  #allocation4 [shape = 'f32[8,128]{1,0:T(8,128)}', space=vmem, size = 0x1000, scoped, tag = 'scratch operand']
  %s0 = inlined_call_operand.hbm [shape: f32[2,16,16,128], index: 0, kind: input, shape index: {}]
  %s1 = inlined_call_operand.hbm [shape: f32[2,16,16,128], index: 1, kind: input, shape index: {}]
  %s2 = inlined_call_operand.hbm [shape: f32[2,16,16,128], index: 2, kind: input, shape index: {}]
  %s3 = inlined_call_operand.vmem [shape: bf16[128,128], index: 3, kind: input, shape index: {}]
  %s4 = inlined_call_operand.vmem [shape: f32[1,128], index: 4, kind: input, shape index: {}]
  %s5 = inlined_call_operand.vmem [shape: f32[9,128], index: 5, kind: input, shape index: {}]
  %s6 = inlined_call_operand.vmem [shape: f32[1,128], index: 6, kind: input, shape index: {}]
  %s7 = inlined_call_operand.vmem [shape: bf16[128,128], index: 7, kind: input, shape index: {}]
  %s8 = inlined_call_operand.vmem [shape: f32[1,128], index: 8, kind: input, shape index: {}]
  %s9 = inlined_call_operand.vmem [shape: f32[128,1], index: 9, kind: input, shape index: {}]
  %s10 = inlined_call_operand.vmem [shape: f32[128,1], index: 10, kind: input, shape index: {}]
  %s11 = inlined_call_operand.hbm [shape: f32[2,16,16,128], index: 11, kind: output, shape index: {}]
  %s12 = sld [smem:[#allocation0]]
  $region93: #{tpu_custom_call.1} parent=0
    _
  %s14 = ssub.s32 1, %s12
  %s15 = scalar_select 0, %s14, %s12
  $region1: #{tpu_custom_call.1} parent=0
    #allocation5 [shape = 'u8[131072]{0}', space=vmem, size = 0x20000, scoped, tag = 'input window, operand 0']
    #allocation6 [shape = 's32[2]{0}', space=sflag, size = 0x8, scoped, tag = 'scoped memory for tpu_custom_call.1']
    #allocation7 [shape = 's32[2]{0}', space=sflag, size = 0x8, scoped, tag = 'scoped memory for tpu_custom_call.1']
    #allocation8 [shape = 'u8[16384]{0}', space=vmem, size = 0x4000, scoped, tag = 'input window, operand 1']
    #allocation9 [shape = 's32[2]{0}', space=sflag, size = 0x8, scoped, tag = 'scoped memory for tpu_custom_call.1']
    #allocation10 [shape = 'u8[16384]{0}', space=vmem, size = 0x4000, scoped, tag = 'input window, operand 2']
    #allocation11 [shape = 'u8[131072]{0}', space=vmem, size = 0x20000, scoped, tag = 'output window, operand 0']
    %16 = vsyncpa [#allocation6], 0
    %s17 = scalar_lea.sflag [#allocation6], 1
    %18 = vsyncpa %s17, 0
    %19 = vsyncpa [#allocation9], 0
    %s20 = scalar_lea.sflag [#allocation9], 1
    %21 = vsyncpa %s20, 0
    %22 = vsyncpa [#allocation7], 0
    %s23 = scalar_lea.sflag [#allocation7], 1
    %24 = vsyncpa %s23, 0
    loop: start=0, step=1, limit=6
    $region2: #{tpu_custom_call.1} parent=1 // loop_pre_header
      _
    $region3: #{tpu_custom_call.1} parent=1 // loop_header
      %s26 = sphi 0, %s30
      %p27 = scmp.ge.s32.totalorder %s26, 6
      %s33 = sphi 0, %s52
      %s34 = sphi 0, %s48
      %s35 = sphi 0, %s44
      %s36 = sphi 0, %s33
      %s37 = sphi 0, %s34
      %s38 = sphi 0, %s35
      %s39 = sphi 0, %s36
      %s40 = sphi 0, %s37
      %s41 = sphi 0, %s38
      %s57 = sphi 0, %s59
      %s60 = sphi 0, %s57
      %s61 = sphi 0, %s60
      %s77 = sphi 0, %s61
      %s93 = sphi 0, %s95
      %s96 = sphi 0, %s93
      %s97 = sphi 0, %s96
      %s113 = sphi 0, %s97
      %s129 = sphi 0, %s131
      %s132 = sphi 0, %s129
      %s133 = sphi 0, %s132
      %s149 = sphi 0, %s133
      %s155 = sphi 0, %s157
      %s158 = sphi 0, %s155
      %s159 = sphi 0, %s158
      %s175 = sphi 0, %s159
      %s181 = sphi 0, %s183
      %s184 = sphi 0, %s181
      %s185 = sphi 0, %s184
      %s201 = sphi 0, %s185
      %s207 = sphi 0, %s209
      %s210 = sphi 0, %s207
      %s211 = sphi 0, %s210
      %s227 = sphi 0, %s211
      %s233 = sphi 0, %s235
      %s236 = sphi 0, %s233
      %s237 = sphi 0, %s236
      %s253 = sphi 0, %s237
      %s259 = sphi 0, %s261
      %s262 = sphi 0, %s259
      %s263 = sphi 0, %s262
      %s279 = sphi 0, %s263
      %s283 = sphi 0, %s283
      %s285 = sphi 0, %s283
      %s286 = sphi 0, %s285
      %s300 = sphi 0, %s286
      %s304 = sphi 0, %s304
      %s306 = sphi 0, %s304
      %s307 = sphi 0, %s306
      %s321 = sphi 0, %s307
      %s325 = sphi 0, %s325
      %s327 = sphi 0, %s325
      %s328 = sphi 0, %s327
      %s342 = sphi 0, %s328
      %s350 = sphi 0, %s352
      %s353 = sphi 0, %s350
      %s354 = sphi 0, %s353
      %s370 = sphi 0, %s354
    $region4: #{tpu_custom_call.1} parent=1 // loop_header_branch
      %29 = sbr.rel (%p27) target = $region8
    $region5: #{tpu_custom_call.1} parent=1 // loop_body
      %s31 = ssub.s32 %s26, 1
      %s32 = ssub.s32 %s26, 2
      %s42 = sadd.s32 1, %s35
      %p43 = scmp.ge.s32.totalorder %s42, 1
      %s44 = scalar_select %p43, 0, %s42
      %s45 = sadd.s32 1, %s34
      %s46 = scalar_select %p43, %s45, %s34
      %p47 = scmp.ge.s32.totalorder %s46, 2
      %s48 = scalar_select %p47, 0, %s46
      %s49 = sadd.s32 1, %s33
      %s50 = scalar_select %p47, %s49, %s33
      %p51 = scmp.ge.s32.totalorder %s50, 2
      %s52 = scalar_select %p51, 0, %s50
      %s53 = ssub.s32 %s33, %s52
      %s54 = ssub.s32 %s34, %s48
      %s55 = sor.u32 %s53, %s54
      %p56 = scmp.eq.s32.totalorder %s55, 0
      %s58 = sadd.s32 %s57, 1
      %s59 = scalar_select %p56, %s57, %s58
      %p62 = pneg %p56
      %p63 = scmp.eq.s32.totalorder %s26, 3
      %p64 = por %p62, %p63
      %p65 = scmp.ne.s32.totalorder %s57, %s60
      %p66 = scmp.eq.s32.totalorder %s26, 0
      %p67 = por %p65, %p66
      %p68 = scmp.ne.s32.totalorder %s57, %s60
      %p69 = scmp.eq.s32.totalorder %s31, 3
      %p70 = por %p68, %p69
      %p71 = scmp.ne.s32.totalorder %s60, %s61
      %p72 = scmp.eq.s32.totalorder %s31, 0
      %p73 = por %p71, %p72
      %p74 = scmp.ne.s32.totalorder %s60, %s61
      %p75 = scmp.eq.s32.totalorder %s32, 3
      %p76 = por %p74, %p75
      %p78 = scmp.ne.s32.totalorder %s61, %s77
      %p79 = scmp.eq.s32.totalorder %s32, 0
      %p80 = por %p78, %p79
      %s81 = smul.u32 %s34, 8
      %s82 = ssub.s32 %s81, 1
      %p83 = scmp.gt.s32.totalorder %s82, 0
      %s84 = scalar_select %p83, %s82, 0
      %s85 = smul.u32 %s48, 8
      %s86 = ssub.s32 %s85, 1
      %p87 = scmp.gt.s32.totalorder %s86, 0
      %s88 = scalar_select %p87, %s86, 0
      %s89 = ssub.s32 %s33, %s52
      %s90 = ssub.s32 %s84, %s88
      %s91 = sor.u32 %s89, %s90
      %p92 = scmp.eq.s32.totalorder %s91, 0
      %s94 = sadd.s32 %s93, 1
      %s95 = scalar_select %p92, %s93, %s94
      %p98 = pneg %p92
      %p99 = scmp.eq.s32.totalorder %s26, 3
      %p100 = por %p98, %p99
      %p101 = scmp.ne.s32.totalorder %s93, %s96
      %p102 = scmp.eq.s32.totalorder %s26, 0
      %p103 = por %p101, %p102
      %p104 = scmp.ne.s32.totalorder %s93, %s96
      %p105 = scmp.eq.s32.totalorder %s31, 3
      %p106 = por %p104, %p105
      %p107 = scmp.ne.s32.totalorder %s96, %s97
      %p108 = scmp.eq.s32.totalorder %s31, 0
      %p109 = por %p107, %p108
      %p110 = scmp.ne.s32.totalorder %s96, %s97
      %p111 = scmp.eq.s32.totalorder %s32, 3
      %p112 = por %p110, %p111
      %p114 = scmp.ne.s32.totalorder %s97, %s113
      %p115 = scmp.eq.s32.totalorder %s32, 0
      %p116 = por %p114, %p115
      %s117 = smul.u32 %s34, 8
      %s118 = sadd.s32 %s117, 8
      %p119 = scmp.lt.s32.totalorder %s118, 15
      %s120 = scalar_select %p119, %s118, 15
      %s121 = smul.u32 %s48, 8
      %s122 = sadd.s32 %s121, 8
      %p123 = scmp.lt.s32.totalorder %s122, 15
      %s124 = scalar_select %p123, %s122, 15
      %s125 = ssub.s32 %s33, %s52
      %s126 = ssub.s32 %s120, %s124
      %s127 = sor.u32 %s125, %s126
      %p128 = scmp.eq.s32.totalorder %s127, 0
      %s130 = sadd.s32 %s129, 1
      %s131 = scalar_select %p128, %s129, %s130
      %p134 = pneg %p128
      %p135 = scmp.eq.s32.totalorder %s26, 3
      %p136 = por %p134, %p135
      %p137 = scmp.ne.s32.totalorder %s129, %s132
      %p138 = scmp.eq.s32.totalorder %s26, 0
      %p139 = por %p137, %p138
      %p140 = scmp.ne.s32.totalorder %s129, %s132
      %p141 = scmp.eq.s32.totalorder %s31, 3
      %p142 = por %p140, %p141
      %p143 = scmp.ne.s32.totalorder %s132, %s133
      %p144 = scmp.eq.s32.totalorder %s31, 0
      %p145 = por %p143, %p144
      %p146 = scmp.ne.s32.totalorder %s132, %s133
      %p147 = scmp.eq.s32.totalorder %s32, 3
      %p148 = por %p146, %p147
      %p150 = scmp.ne.s32.totalorder %s133, %s149
      %p151 = scmp.eq.s32.totalorder %s32, 0
      %p152 = por %p150, %p151
      %s153 = ssub.s32 %s35, %s44
      %p154 = scmp.eq.s32.totalorder %s153, 0
      %s156 = sadd.s32 %s155, 1
      %s157 = scalar_select %p154, %s155, %s156
      %p160 = pneg %p154
      %p161 = scmp.eq.s32.totalorder %s26, 3
      %p162 = por %p160, %p161
      %p163 = scmp.ne.s32.totalorder %s155, %s158
      %p164 = scmp.eq.s32.totalorder %s26, 0
      %p165 = por %p163, %p164
      %p166 = scmp.ne.s32.totalorder %s155, %s158
      %p167 = scmp.eq.s32.totalorder %s31, 3
      %p168 = por %p166, %p167
      %p169 = scmp.ne.s32.totalorder %s158, %s159
      %p170 = scmp.eq.s32.totalorder %s31, 0
      %p171 = por %p169, %p170
      %p172 = scmp.ne.s32.totalorder %s158, %s159
      %p173 = scmp.eq.s32.totalorder %s32, 3
      %p174 = por %p172, %p173
      %p176 = scmp.ne.s32.totalorder %s159, %s175
      %p177 = scmp.eq.s32.totalorder %s32, 0
      %p178 = por %p176, %p177
      %s179 = ssub.s32 %s35, %s44
      %p180 = scmp.eq.s32.totalorder %s179, 0
      %s182 = sadd.s32 %s181, 1
      %s183 = scalar_select %p180, %s181, %s182
      %p186 = pneg %p180
      %p187 = scmp.eq.s32.totalorder %s26, 3
      %p188 = por %p186, %p187
      %p189 = scmp.ne.s32.totalorder %s181, %s184
      %p190 = scmp.eq.s32.totalorder %s26, 0
      %p191 = por %p189, %p190
      %p192 = scmp.ne.s32.totalorder %s181, %s184
      %p193 = scmp.eq.s32.totalorder %s31, 3
      %p194 = por %p192, %p193
      %p195 = scmp.ne.s32.totalorder %s184, %s185
      %p196 = scmp.eq.s32.totalorder %s31, 0
      %p197 = por %p195, %p196
      %p198 = scmp.ne.s32.totalorder %s184, %s185
      %p199 = scmp.eq.s32.totalorder %s32, 3
      %p200 = por %p198, %p199
      %p202 = scmp.ne.s32.totalorder %s185, %s201
      %p203 = scmp.eq.s32.totalorder %s32, 0
      %p204 = por %p202, %p203
      %s205 = ssub.s32 %s35, %s44
      %p206 = scmp.eq.s32.totalorder %s205, 0
      %s208 = sadd.s32 %s207, 1
      %s209 = scalar_select %p206, %s207, %s208
      %p212 = pneg %p206
      %p213 = scmp.eq.s32.totalorder %s26, 3
      %p214 = por %p212, %p213
      %p215 = scmp.ne.s32.totalorder %s207, %s210
      %p216 = scmp.eq.s32.totalorder %s26, 0
      %p217 = por %p215, %p216
      %p218 = scmp.ne.s32.totalorder %s207, %s210
      %p219 = scmp.eq.s32.totalorder %s31, 3
      %p220 = por %p218, %p219
      %p221 = scmp.ne.s32.totalorder %s210, %s211
      %p222 = scmp.eq.s32.totalorder %s31, 0
      %p223 = por %p221, %p222
      %p224 = scmp.ne.s32.totalorder %s210, %s211
      %p225 = scmp.eq.s32.totalorder %s32, 3
      %p226 = por %p224, %p225
      %p228 = scmp.ne.s32.totalorder %s211, %s227
      %p229 = scmp.eq.s32.totalorder %s32, 0
      %p230 = por %p228, %p229
      %s231 = ssub.s32 %s35, %s44
      %p232 = scmp.eq.s32.totalorder %s231, 0
      %s234 = sadd.s32 %s233, 1
      %s235 = scalar_select %p232, %s233, %s234
      %p238 = pneg %p232
      %p239 = scmp.eq.s32.totalorder %s26, 3
      %p240 = por %p238, %p239
      %p241 = scmp.ne.s32.totalorder %s233, %s236
      %p242 = scmp.eq.s32.totalorder %s26, 0
      %p243 = por %p241, %p242
      %p244 = scmp.ne.s32.totalorder %s233, %s236
      %p245 = scmp.eq.s32.totalorder %s31, 3
      %p246 = por %p244, %p245
      %p247 = scmp.ne.s32.totalorder %s236, %s237
      %p248 = scmp.eq.s32.totalorder %s31, 0
      %p249 = por %p247, %p248
      %p250 = scmp.ne.s32.totalorder %s236, %s237
      %p251 = scmp.eq.s32.totalorder %s32, 3
      %p252 = por %p250, %p251
      %p254 = scmp.ne.s32.totalorder %s237, %s253
      %p255 = scmp.eq.s32.totalorder %s32, 0
      %p256 = por %p254, %p255
      %s257 = ssub.s32 %s35, %s44
      %p258 = scmp.eq.s32.totalorder %s257, 0
      %s260 = sadd.s32 %s259, 1
      %s261 = scalar_select %p258, %s259, %s260
      %p264 = pneg %p258
      %p265 = scmp.eq.s32.totalorder %s26, 3
      %p266 = por %p264, %p265
      %p267 = scmp.ne.s32.totalorder %s259, %s262
      %p268 = scmp.eq.s32.totalorder %s26, 0
      %p269 = por %p267, %p268
      %p270 = scmp.ne.s32.totalorder %s259, %s262
      %p271 = scmp.eq.s32.totalorder %s31, 3
      %p272 = por %p270, %p271
      %p273 = scmp.ne.s32.totalorder %s262, %s263
      %p274 = scmp.eq.s32.totalorder %s31, 0
      %p275 = por %p273, %p274
      %p276 = scmp.ne.s32.totalorder %s262, %s263
      %p277 = scmp.eq.s32.totalorder %s32, 3
      %p278 = por %p276, %p277
      %p280 = scmp.ne.s32.totalorder %s263, %s279
      %p281 = scmp.eq.s32.totalorder %s32, 0
      %p282 = por %p280, %p281
      %s284 = sadd.s32 %s283, 1
      %p287 = scmp.eq.s32.totalorder %s26, 3
      %p288 = scmp.ne.s32.totalorder %s283, %s285
      %p289 = scmp.eq.s32.totalorder %s26, 0
      %p290 = por %p288, %p289
      %p291 = scmp.ne.s32.totalorder %s283, %s285
      %p292 = scmp.eq.s32.totalorder %s31, 3
      %p293 = por %p291, %p292
      %p294 = scmp.ne.s32.totalorder %s285, %s286
      %p295 = scmp.eq.s32.totalorder %s31, 0
      %p296 = por %p294, %p295
      %p297 = scmp.ne.s32.totalorder %s285, %s286
      %p298 = scmp.eq.s32.totalorder %s32, 3
      %p299 = por %p297, %p298
      %p301 = scmp.ne.s32.totalorder %s286, %s300
      %p302 = scmp.eq.s32.totalorder %s32, 0
      %p303 = por %p301, %p302
      %s305 = sadd.s32 %s304, 1
      %p308 = scmp.eq.s32.totalorder %s26, 3
      %p309 = scmp.ne.s32.totalorder %s304, %s306
      %p310 = scmp.eq.s32.totalorder %s26, 0
      %p311 = por %p309, %p310
      %p312 = scmp.ne.s32.totalorder %s304, %s306
      %p313 = scmp.eq.s32.totalorder %s31, 3
      %p314 = por %p312, %p313
      %p315 = scmp.ne.s32.totalorder %s306, %s307
      %p316 = scmp.eq.s32.totalorder %s31, 0
      %p317 = por %p315, %p316
      %p318 = scmp.ne.s32.totalorder %s306, %s307
      %p319 = scmp.eq.s32.totalorder %s32, 3
      %p320 = por %p318, %p319
      %p322 = scmp.ne.s32.totalorder %s307, %s321
      %p323 = scmp.eq.s32.totalorder %s32, 0
      %p324 = por %p322, %p323
      %s326 = sadd.s32 %s325, 1
      %p329 = scmp.eq.s32.totalorder %s26, 3
      %p330 = scmp.ne.s32.totalorder %s325, %s327
      %p331 = scmp.eq.s32.totalorder %s26, 0
      %p332 = por %p330, %p331
      %p333 = scmp.ne.s32.totalorder %s325, %s327
      %p334 = scmp.eq.s32.totalorder %s31, 3
      %p335 = por %p333, %p334
      %p336 = scmp.ne.s32.totalorder %s327, %s328
      %p337 = scmp.eq.s32.totalorder %s31, 0
      %p338 = por %p336, %p337
      %p339 = scmp.ne.s32.totalorder %s327, %s328
      %p340 = scmp.eq.s32.totalorder %s32, 3
      %p341 = por %p339, %p340
      %p343 = scmp.ne.s32.totalorder %s328, %s342
      %p344 = scmp.eq.s32.totalorder %s32, 0
      %p345 = por %p343, %p344
      %s346 = ssub.s32 %s33, %s52
      %s347 = ssub.s32 %s34, %s48
      %s348 = sor.u32 %s346, %s347
      %p349 = scmp.eq.s32.totalorder %s348, 0
      %s351 = sadd.s32 %s350, 1
      %s352 = scalar_select %p349, %s350, %s351
      %p355 = pneg %p349
      %p356 = scmp.eq.s32.totalorder %s26, 3
      %p357 = por %p355, %p356
      %p358 = scmp.ne.s32.totalorder %s350, %s353
      %p359 = scmp.eq.s32.totalorder %s26, 0
      %p360 = por %p358, %p359
      %p361 = scmp.ne.s32.totalorder %s350, %s353
      %p362 = scmp.eq.s32.totalorder %s31, 3
      %p363 = por %p361, %p362
      %p364 = scmp.ne.s32.totalorder %s353, %s354
      %p365 = scmp.eq.s32.totalorder %s31, 0
      %p366 = por %p364, %p365
      %p367 = scmp.ne.s32.totalorder %s353, %s354
      %p368 = scmp.eq.s32.totalorder %s32, 3
      %p369 = por %p367, %p368
      %p371 = scmp.ne.s32.totalorder %s354, %s370
      %p372 = scmp.eq.s32.totalorder %s32, 0
      %p373 = por %p371, %p372
      %p374 = scmp.le.s32.totalorder 1, %s26
      %p375 = scmp.lt.s32.totalorder %s26, 5
      %p376 = pnand %p374, %p375
      %p377 = pneg %p376
      // Predicated region
      $region9: #{tpu_custom_call.1} parent=5 // pred_check
        _
      $region10: #{tpu_custom_call.1} parent=5 // pred_check_branch
        %379 = sbr.rel (%p376) target = $region12
      $region11: #{tpu_custom_call.1} parent=5 // pred_region
        %s380 = ssub.s32 %s26, 1
        // Predicated region
        $region13: #{tpu_custom_call.1} parent=11 // pred_check
          %p381 = pneg %p171
        $region14: #{tpu_custom_call.1} parent=11 // pred_check_branch
          %383 = sbr.rel (%p381) target = $region16
        $region15: #{tpu_custom_call.1} parent=11 // pred_region
          %p384 = scmp.lt.s32.totalorder %s38, 0
          %s385 = scalar_select %p384, %s38, 0
          %s386 = smul.addr %s385, 4
          %s387 = scalar_lea.vmem %s3, %s386
        $region16: #{tpu_custom_call.1} parent=11 // pred_fallthru
          _
        // Predicated region
        $region17: #{tpu_custom_call.1} parent=11 // pred_check
          %p388 = pneg %p197
        $region18: #{tpu_custom_call.1} parent=11 // pred_check_branch
          %390 = sbr.rel (%p388) target = $region20
        $region19: #{tpu_custom_call.1} parent=11 // pred_region
          %p391 = scmp.lt.s32.totalorder %s38, 0
          %s392 = scalar_select %p391, %s38, 0
          %s393 = scalar_lea.vmem %s4, %s392
        $region20: #{tpu_custom_call.1} parent=11 // pred_fallthru
          _
        // Predicated region
        $region21: #{tpu_custom_call.1} parent=11 // pred_check
          %p394 = pneg %p223
        $region22: #{tpu_custom_call.1} parent=11 // pred_check_branch
          %396 = sbr.rel (%p394) target = $region24
        $region23: #{tpu_custom_call.1} parent=11 // pred_region
          %p397 = scmp.lt.s32.totalorder %s38, 0
          %s398 = scalar_select %p397, %s38, 0
          %s399 = smul.addr %s398, 8
          %s400 = scalar_lea.vmem %s5, %s399
        $region24: #{tpu_custom_call.1} parent=11 // pred_fallthru
          _
        // Predicated region
        $region25: #{tpu_custom_call.1} parent=11 // pred_check
          %p401 = pneg %p249
        $region26: #{tpu_custom_call.1} parent=11 // pred_check_branch
          %403 = sbr.rel (%p401) target = $region28
        $region27: #{tpu_custom_call.1} parent=11 // pred_region
          %p404 = scmp.lt.s32.totalorder %s38, 0
          %s405 = scalar_select %p404, %s38, 0
          %s406 = scalar_lea.vmem %s6, %s405
        $region28: #{tpu_custom_call.1} parent=11 // pred_fallthru
          _
        // Predicated region
        $region29: #{tpu_custom_call.1} parent=11 // pred_check
          %p407 = pneg %p275
        $region30: #{tpu_custom_call.1} parent=11 // pred_check_branch
          %409 = sbr.rel (%p407) target = $region32
        $region31: #{tpu_custom_call.1} parent=11 // pred_region
          %s410 = smul.u32 16, %s38
          %p411 = scmp.lt.s32.totalorder %s410, 15
          %s412 = scalar_select %p411, %s410, 15
          %s413 = smul.addr %s412, 4
          %s414 = scalar_lea.vmem %s7, %s413
          %s415 = smul.u32 16, %s38
        $region32: #{tpu_custom_call.1} parent=11 // pred_fallthru
          _
        // Predicated region
        $region33: #{tpu_custom_call.1} parent=11 // pred_check
          %p416 = pneg %p296
        $region34: #{tpu_custom_call.1} parent=11 // pred_check_branch
          %418 = sbr.rel (%p416) target = $region36
        $region35: #{tpu_custom_call.1} parent=11 // pred_region
          _
        $region36: #{tpu_custom_call.1} parent=11 // pred_fallthru
          _
        // Predicated region
        $region37: #{tpu_custom_call.1} parent=11 // pred_check
          %p419 = pneg %p317
        $region38: #{tpu_custom_call.1} parent=11 // pred_check_branch
          %421 = sbr.rel (%p419) target = $region40
        $region39: #{tpu_custom_call.1} parent=11 // pred_region
          _
        $region40: #{tpu_custom_call.1} parent=11 // pred_fallthru
          _
        // Predicated region
        $region41: #{tpu_custom_call.1} parent=11 // pred_check
          %p422 = pneg %p338
        $region42: #{tpu_custom_call.1} parent=11 // pred_check_branch
          %424 = sbr.rel (%p422) target = $region44
        $region43: #{tpu_custom_call.1} parent=11 // pred_region
          _
        $region44: #{tpu_custom_call.1} parent=11 // pred_fallthru
          _
      $region12: #{tpu_custom_call.1} parent=5 // pred_fallthru
        _
      %p425 = scmp.lt.s32.totalorder %s26, 4
      // Predicated region
      $region45: #{tpu_custom_call.1} parent=5 // pred_check
        %p426 = pneg %p425
      $region46: #{tpu_custom_call.1} parent=5 // pred_check_branch
        %428 = sbr.rel (%p426) target = $region48
      $region47: #{tpu_custom_call.1} parent=5 // pred_region
        // Predicated region
        $region49: #{tpu_custom_call.1} parent=47 // pred_check
          %p429 = pneg %p67
        $region50: #{tpu_custom_call.1} parent=47 // pred_check_branch
          %431 = sbr.rel (%p429) target = $region52
        $region51: #{tpu_custom_call.1} parent=47 // pred_region
          %s432 = sand.u32 %s57, 1
          %s433 = scalar_lea.sflag [#allocation6], %s432
          %s434 = sand.u32 %s57, 1
          %s435 = smul.addr %s434, 128
          %s436 = scalar_lea.vmem [#allocation5], %s435
          %s437 = smul.u32 8, %s34
          %s439 = ssub.s32 2048, 2048
          %440 = vsyncadd %s433, %s439
          %s441 = smul.addr %s437, 2
          %s442 = smul.addr %s33, 32
          %s443 = sadd.s32 %s441, %s442
          %s444 = smul.addr %s443, 128
          %s445 = scalar_lea.hbm %s0, %s444
          %s446 = sshll.u32 %s436, 4
          %s447 = int_to_ptr.vmem [resolvable:$true] %s446
          %452 = dma.hbm_to_vmem [thread:$0]  %s445, 2048, %s447, %s433, 128, 128, 8
        $region52: #{tpu_custom_call.1} parent=47 // pred_fallthru
          _
        // Predicated region
        $region53: #{tpu_custom_call.1} parent=47 // pred_check
          %p453 = pneg %p103
        $region54: #{tpu_custom_call.1} parent=47 // pred_check_branch
          %455 = sbr.rel (%p453) target = $region56
        $region55: #{tpu_custom_call.1} parent=47 // pred_region
          %s456 = sand.u32 %s26, 1
          %s457 = scalar_lea.sflag [#allocation9], %s456
          %s458 = sand.u32 %s93, 1
          %s459 = smul.addr %s458, 16
          %s460 = scalar_lea.vmem [#allocation8], %s459
          %s461 = smul.u32 %s34, 8
          %s462 = ssub.s32 %s461, 1
          %p463 = scmp.gt.s32.totalorder %s462, 0
          %s464 = scalar_select %p463, %s462, 0
          %s466 = ssub.s32 256, 256
          %467 = vsyncadd %s457, %s466
          %s468 = smul.addr %s464, 2
          %s469 = smul.addr %s33, 32
          %s470 = sadd.s32 %s468, %s469
          %s471 = smul.addr %s470, 128
          %s472 = scalar_lea.hbm %s1, %s471
          %s473 = sshll.u32 %s460, 4
          %s474 = int_to_ptr.vmem [resolvable:$true] %s473
          %479 = dma.hbm_to_vmem [thread:$0]  %s472, 256, %s474, %s457, 128, 128, 8
        $region56: #{tpu_custom_call.1} parent=47 // pred_fallthru
          _
        // Predicated region
        $region57: #{tpu_custom_call.1} parent=47 // pred_check
          %p480 = pneg %p139
        $region58: #{tpu_custom_call.1} parent=47 // pred_check_branch
          %482 = sbr.rel (%p480) target = $region60
        $region59: #{tpu_custom_call.1} parent=47 // pred_region
          %s483 = sand.u32 %s26, 1
          %s484 = scalar_lea.sflag [#allocation9], %s483
          %s485 = sand.u32 %s129, 1
          %s486 = smul.addr %s485, 16
          %s487 = scalar_lea.vmem [#allocation10], %s486
          %s488 = smul.u32 %s34, 8
          %s489 = sadd.s32 %s488, 8
          %p490 = scmp.lt.s32.totalorder %s489, 15
          %s491 = scalar_select %p490, %s489, 15
          %s493 = ssub.s32 256, 256
          %494 = vsyncadd %s484, %s493
          %s495 = smul.addr %s491, 2
          %s496 = smul.addr %s33, 32
          %s497 = sadd.s32 %s495, %s496
          %s498 = smul.addr %s497, 128
          %s499 = scalar_lea.hbm %s2, %s498
          %s500 = sshll.u32 %s487, 4
          %s501 = int_to_ptr.vmem [resolvable:$true] %s500
          %506 = dma.hbm_to_vmem [thread:$0]  %s499, 256, %s501, %s484, 128, 128, 8
        $region60: #{tpu_custom_call.1} parent=47 // pred_fallthru
          _
      $region48: #{tpu_custom_call.1} parent=5 // pred_fallthru
        _
      %p507 = scmp.le.s32.totalorder 1, %s26
      %p508 = scmp.lt.s32.totalorder %s26, 5
      %p509 = pnand %p507, %p508
      %p510 = pneg %p509
      // Predicated region
      $region61: #{tpu_custom_call.1} parent=5 // pred_check
        _
      $region62: #{tpu_custom_call.1} parent=5 // pred_check_branch
        %512 = sbr.rel (%p509) target = $region64
      $region63: #{tpu_custom_call.1} parent=5 // pred_region
        %s513 = ssub.s32 %s26, 1
        %s514 = sand.u32 %s60, 1
        %s515 = scalar_lea.sflag [#allocation6], %s514
        %s516 = sand.u32 %s60, 1
        %s517 = smul.addr %s516, 128
        %s518 = scalar_lea.vmem [#allocation5], %s517
        // Predicated region
        $region65: #{tpu_custom_call.1} parent=63 // pred_check
          %p519 = pneg %p73
        $region66: #{tpu_custom_call.1} parent=63 // pred_check_branch
          %521 = sbr.rel (%p519) target = $region68
        $region67: #{tpu_custom_call.1} parent=63 // pred_region
          %522 = dma.done %s515, 2048
        $region68: #{tpu_custom_call.1} parent=63 // pred_fallthru
          _
        %s523 = sand.u32 %s31, 1
        %s524 = scalar_lea.sflag [#allocation9], %s523
        %s525 = sand.u32 %s96, 1
        %s526 = smul.addr %s525, 16
        %s527 = scalar_lea.vmem [#allocation8], %s526
        // Predicated region
        $region69: #{tpu_custom_call.1} parent=63 // pred_check
          %p528 = pneg %p109
        $region70: #{tpu_custom_call.1} parent=63 // pred_check_branch
          %530 = sbr.rel (%p528) target = $region72
        $region71: #{tpu_custom_call.1} parent=63 // pred_region
          %531 = dma.done %s524, 256
        $region72: #{tpu_custom_call.1} parent=63 // pred_fallthru
          _
        %s532 = sand.u32 %s31, 1
        %s533 = scalar_lea.sflag [#allocation9], %s532
        %s534 = sand.u32 %s132, 1
        %s535 = smul.addr %s534, 16
        %s536 = scalar_lea.vmem [#allocation10], %s535
        // Predicated region
        $region73: #{tpu_custom_call.1} parent=63 // pred_check
          %p537 = pneg %p145
        $region74: #{tpu_custom_call.1} parent=63 // pred_check_branch
          %539 = sbr.rel (%p537) target = $region76
        $region75: #{tpu_custom_call.1} parent=63 // pred_region
          %540 = dma.done %s533, 256
        $region76: #{tpu_custom_call.1} parent=63 // pred_fallthru
          _
        %s541 = sand.u32 %s60, 1
        %s542 = scalar_lea.sflag [#allocation6], %s541
        %s543 = sand.u32 %s60, 1
        %s544 = smul.addr %s543, 128
        %s545 = scalar_lea.vmem [#allocation5], %s544
        %p546 = pneg %p73
        %p547 = pneg %p70
        %s548 = sand.u32 %s31, 1
        %s549 = scalar_lea.sflag [#allocation9], %s548
        %s550 = sand.u32 %s96, 1
        %s551 = smul.addr %s550, 16
        %s552 = scalar_lea.vmem [#allocation8], %s551
        %p553 = pneg %p109
        %p554 = pneg %p106
        %s555 = sand.u32 %s31, 1
        %s556 = scalar_lea.sflag [#allocation9], %s555
        %s557 = sand.u32 %s132, 1
        %s558 = smul.addr %s557, 16
        %s559 = scalar_lea.vmem [#allocation10], %s558
        %p560 = pneg %p145
        %p561 = pneg %p142
        %p562 = scmp.lt.s32.totalorder %s38, 0
        %s563 = scalar_select %p562, %s38, 0
        %s564 = smul.addr %s563, 4
        %s565 = scalar_lea.vmem %s3, %s564
        %p566 = pneg %p171
        %p567 = pneg %p168
        %p568 = scmp.lt.s32.totalorder %s38, 0
        %s569 = scalar_select %p568, %s38, 0
        %s570 = scalar_lea.vmem %s4, %s569
        %p571 = pneg %p197
        %p572 = pneg %p194
        %p573 = scmp.lt.s32.totalorder %s38, 0
        %s574 = scalar_select %p573, %s38, 0
        %s575 = smul.addr %s574, 8
        %s576 = scalar_lea.vmem %s5, %s575
        %p577 = pneg %p223
        %p578 = pneg %p220
        %p579 = scmp.lt.s32.totalorder %s38, 0
        %s580 = scalar_select %p579, %s38, 0
        %s581 = scalar_lea.vmem %s6, %s580
        %p582 = pneg %p249
        %p583 = pneg %p246
        %s584 = smul.u32 16, %s38
        %p585 = scmp.lt.s32.totalorder %s584, 15
        %s586 = scalar_select %p585, %s584, 15
        %s587 = smul.addr %s586, 4
        %s588 = scalar_lea.vmem %s7, %s587
        %p589 = pneg %p275
        %p590 = pneg %p272
        %p591 = pneg %p296
        %p592 = pneg %p293
        %p593 = pneg %p317
        %p594 = pneg %p314
        %p595 = pneg %p338
        %p596 = pneg %p335
        %p597 = pneg %p366
        %p598 = pneg %p363
        %s599 = sand.u32 %s353, 1
        %s600 = scalar_lea.sflag [#allocation7], %s599
        %s601 = sand.u32 %s353, 1
        %s602 = smul.addr %s601, 128
        %s603 = scalar_lea.vmem [#allocation11], %s602
        %s604 = smul.u32 8, %s37
        %s605 = smul.u32 %s37, 8
        %s606 = ssub.s32 %s605, 1
        %p607 = scmp.gt.s32.totalorder %s606, 0
        %s608 = scalar_select %p607, %s606, 0
        %s609 = smul.u32 %s37, 8
        %s610 = sadd.s32 %s609, 8
        %p611 = scmp.lt.s32.totalorder %s610, 15
        %s612 = scalar_select %p611, %s610, 15
        %p613 = scmp.lt.s32.totalorder %s38, 0
        %s614 = scalar_select %p613, %s38, 0
        %s615 = smul.addr %s614, 4
        %s616 = scalar_lea.vmem %s3, %s615
        %p617 = scmp.lt.s32.totalorder %s38, 0
        %s618 = scalar_select %p617, %s38, 0
        %s619 = scalar_lea.vmem %s4, %s618
        %p620 = scmp.lt.s32.totalorder %s38, 0
        %s621 = scalar_select %p620, %s38, 0
        %s622 = smul.addr %s621, 8
        %s623 = scalar_lea.vmem %s5, %s622
        %p624 = scmp.lt.s32.totalorder %s38, 0
        %s625 = scalar_select %p624, %s38, 0
        %s626 = scalar_lea.vmem %s6, %s625
        %s627 = smul.u32 16, %s38
        %p628 = scmp.lt.s32.totalorder %s627, 15
        %s629 = scalar_select %p628, %s627, 15
        %s630 = smul.addr %s629, 4
        %s631 = scalar_lea.vmem %s7, %s630
        %s632 = smul.u32 16, %s38
        %s633 = smul.u32 8, %s37
        %p635 = scmp.eq.s32.totalorder %s38, 0
        // Predicated region
        $region77: #{tpu_custom_call.1} parent=63 // pred_check
          %p636 = pneg %p635
        $region78: #{tpu_custom_call.1} parent=63 // pred_check_branch
          %638 = sbr.rel (%p636) target = $region80
        $region79: #{tpu_custom_call.1} parent=63 // pred_region
          %v639 = vld [vmem:[%s527] sm:$0xff]
          %v640 = vld [vmem:[%s527 + $0x8] sm:$0xff]
          %v641 = vpack.c.bf16 %v640, %v639
          %642 = vst [vmem:[#allocation2] sm:$0xff] %v641
          %v643 = vld [vmem:[%s518] sm:$0xff]
          %v644 = vld [vmem:[%s518 + $0x8] sm:$0xff]
          %v645 = vld [vmem:[%s518 + $0x10] sm:$0xff]
          %v646 = vld [vmem:[%s518 + $0x18] sm:$0xff]
          %v647 = vld [vmem:[%s518 + $0x20] sm:$0xff]
          %v648 = vld [vmem:[%s518 + $0x28] sm:$0xff]
          %v649 = vld [vmem:[%s518 + $0x30] sm:$0xff]
          %v650 = vld [vmem:[%s518 + $0x38] sm:$0xff]
          %v651 = vld [vmem:[%s518 + $0x40] sm:$0xff]
          %v652 = vld [vmem:[%s518 + $0x48] sm:$0xff]
          %v653 = vld [vmem:[%s518 + $0x50] sm:$0xff]
          %v654 = vld [vmem:[%s518 + $0x58] sm:$0xff]
          %v655 = vld [vmem:[%s518 + $0x60] sm:$0xff]
          %v656 = vld [vmem:[%s518 + $0x68] sm:$0xff]
          %v657 = vld [vmem:[%s518 + $0x70] sm:$0xff]
          %v658 = vld [vmem:[%s518 + $0x78] sm:$0xff]
          %v659 = vpack.c.bf16 %v644, %v643
          %v660 = vpack.c.bf16 %v646, %v645
          %v661 = vpack.c.bf16 %v648, %v647
          %v662 = vpack.c.bf16 %v650, %v649
          %v663 = vpack.c.bf16 %v652, %v651
          %v664 = vpack.c.bf16 %v654, %v653
          %v665 = vpack.c.bf16 %v656, %v655
          %v666 = vpack.c.bf16 %v658, %v657
          %667 = vst [vmem:[#allocation2 + $0x8] sm:$0xff] %v659
          %668 = vst [vmem:[#allocation2 + $0x10] sm:$0xff] %v660
          %669 = vst [vmem:[#allocation2 + $0x18] sm:$0xff] %v661
          %670 = vst [vmem:[#allocation2 + $0x20] sm:$0xff] %v662
          %671 = vst [vmem:[#allocation2 + $0x28] sm:$0xff] %v663
          %672 = vst [vmem:[#allocation2 + $0x30] sm:$0xff] %v664
          %673 = vst [vmem:[#allocation2 + $0x38] sm:$0xff] %v665
          %674 = vst [vmem:[#allocation2 + $0x40] sm:$0xff] %v666
          %v675 = vld [vmem:[%s536] sm:$0xff]
          %v676 = vld [vmem:[%s536 + $0x8] sm:$0xff]
          %v677 = vpack.c.bf16 %v676, %v675
          %678 = vst [vmem:[#allocation2 + $0x48] sm:$0xff] %v677
        $region80: #{tpu_custom_call.1} parent=63 // pred_fallthru
          _
        %v679 = vld [vmem:[#allocation2] sm:$0xff]
        %v680 = vld [vmem:[#allocation2 + $0x8] sm:$0xff]
        %v681 = vld [vmem:[#allocation2 + $0x10] sm:$0xff]
        %v682 = vld [vmem:[#allocation2 + $0x18] sm:$0xff]
        %v683 = vld [vmem:[#allocation2 + $0x20] sm:$0xff]
        %v684 = vld [vmem:[#allocation2 + $0x28] sm:$0xff]
        %v685 = vld [vmem:[#allocation2 + $0x30] sm:$0xff]
        %v686 = vld [vmem:[#allocation2 + $0x38] sm:$0xff]
        %v687 = vld [vmem:[#allocation2 + $0x40] sm:$0xff]
        %v688 = vld [vmem:[#allocation2 + $0x48] sm:$0xff]
        %v689 = vld [vmem:[%s616] sm:$0xf]
        %v690 = vld [vmem:[%s616 + $0x4] sm:$0xf]
        %v691 = vld [vmem:[%s616 + $0x8] sm:$0xf]
        %v692 = vld [vmem:[%s616 + $0xc] sm:$0xf]
        %v693 = vld [vmem:[%s616 + $0x10] sm:$0xf]
        %v694 = vld [vmem:[%s616 + $0x14] sm:$0xf]
        %v695 = vld [vmem:[%s616 + $0x18] sm:$0xf]
        %v696 = vld [vmem:[%s616 + $0x1c] sm:$0xf]
        %v697 = vld [vmem:[%s616 + $0x20] sm:$0xf]
        %v698 = vld [vmem:[%s616 + $0x24] sm:$0xf]
        %v699 = vld [vmem:[%s616 + $0x28] sm:$0xf]
        %v700 = vld [vmem:[%s616 + $0x2c] sm:$0xf]
        %v701 = vld [vmem:[%s616 + $0x30] sm:$0xf]
        %v702 = vld [vmem:[%s616 + $0x34] sm:$0xf]
        %v703 = vld [vmem:[%s616 + $0x38] sm:$0xf]
        %v704 = vld [vmem:[%s616 + $0x3c] sm:$0xf]
        %v705 = vld [vmem:[%s619] sm:$0x1]
        %v707 = vlaneseq
        %v708 = vshrl.u32 %v707, 7
        %v709 = vsub.s32 0, %v708
        %v710 = vrot.slane %v705, %v709
        %v728 = vunpack.c.l.b16 %v689
        %v729 = vunpack.c.l.b16 %v690
        %v730 = vunpack.c.l.b16 %v691
        %v731 = vunpack.c.l.b16 %v692
        %v732 = vunpack.c.l.b16 %v693
        %v733 = vunpack.c.l.b16 %v694
        %v734 = vunpack.c.l.b16 %v695
        %v735 = vunpack.c.l.b16 %v696
        %v736 = vunpack.c.l.b16 %v697
        %v737 = vunpack.c.l.b16 %v698
        %v738 = vunpack.c.l.b16 %v699
        %v739 = vunpack.c.l.b16 %v700
        %v740 = vunpack.c.l.b16 %v701
        %v741 = vunpack.c.l.b16 %v702
        %v742 = vunpack.c.l.b16 %v703
        %v743 = vunpack.c.l.b16 %v704
        %v744 = vpack.c.b16 %v729, %v728
        %v745 = vpack.c.b16 %v731, %v730
        %v746 = vpack.c.b16 %v733, %v732
        %v747 = vpack.c.b16 %v735, %v734
        %v748 = vpack.c.b16 %v737, %v736
        %v749 = vpack.c.b16 %v739, %v738
        %v750 = vpack.c.b16 %v741, %v740
        %v751 = vpack.c.b16 %v743, %v742
        %760 = vmatprep.subr.bf16.mxu0 0
        %761 = vmatpush1.bf16.msra.mxu0 %v744
        %762 = vmatprep.subr.bf16.mxu0 0
        %763 = vmatpush1.bf16.msra.mxu0 %v745
        %764 = vmatprep.subr.bf16.mxu0 0
        %765 = vmatpush1.bf16.msra.mxu0 %v746
        %766 = vmatprep.subr.bf16.mxu0 0
        %767 = vmatpush1.bf16.msra.mxu0 %v747
        %768 = vmatprep.subr.bf16.mxu0 0
        %769 = vmatpush1.bf16.msra.mxu0 %v748
        %770 = vmatprep.subr.bf16.mxu0 0
        %771 = vmatpush1.bf16.msra.mxu0 %v749
        %772 = vmatprep.subr.bf16.mxu0 0
        %773 = vmatpush1.bf16.msra.mxu0 %v750
        %774 = vmatprep.subr.bf16.mxu0 0
        %775 = vmatpush1.bf16.msra.mxu0 %v751
        %776 = vmatprep.subr.bf16.mxu0 0
        %777 = vmatpush1.bf16.msra.mxu0 0
        %778 = vmatprep.subr.bf16.mxu0 0
        %779 = vmatpush1.bf16.msra.mxu0 0
        %780 = vmatprep.subr.bf16.mxu0 0
        %781 = vmatpush1.bf16.msra.mxu0 0
        %782 = vmatprep.subr.bf16.mxu0 0
        %783 = vmatpush1.bf16.msra.mxu0 0
        %784 = vmatprep.subr.bf16.mxu0 0
        %785 = vmatpush1.bf16.msra.mxu0 0
        %786 = vmatprep.subr.bf16.mxu0 0
        %787 = vmatpush1.bf16.msra.mxu0 0
        %788 = vmatprep.subr.bf16.mxu0 0
        %789 = vmatpush1.bf16.msra.mxu0 0
        %790 = vmatprep.subr.bf16.mxu0 0
        %791 = vmatpush1.bf16.msra.mxu0 0
        %792 = vmatprep.mubr.bf16.mxu0 0
        %793 = vmatmul.mubr.bf16.gmra.mrb[0].mxu0 %v679
        %v794 = vpop.f32.mrb[0].mxu0
        %v795 = vadd.f32 %v710, %v794
        %v796 = vpop.f32.mrb[0].mxu0
        %v797 = vpop.f32.mrb[0].mxu0
        %v798 = vadd.f32 %v710, %v797
        %v799 = vpop.f32.mrb[0].mxu0
        %800 = vmatprep.mubr.bf16.mxu0 0
        %801 = vmatmul.mubr.bf16.gmra.mrb[0].mxu0 %v680
        %v802 = vpop.f32.mrb[0].mxu0
        %v803 = vadd.f32 %v710, %v802
        %v804 = vpop.f32.mrb[0].mxu0
        %v805 = vpop.f32.mrb[0].mxu0
        %v806 = vadd.f32 %v710, %v805
        %v807 = vpop.f32.mrb[0].mxu0
        %808 = vmatprep.mubr.bf16.mxu0 0
        %809 = vmatmul.mubr.bf16.gmra.mrb[0].mxu0 %v681
        %v810 = vpop.f32.mrb[0].mxu0
        %v811 = vadd.f32 %v710, %v810
        %v812 = vpop.f32.mrb[0].mxu0
        %v813 = vpop.f32.mrb[0].mxu0
        %v814 = vadd.f32 %v710, %v813
        %v815 = vpop.f32.mrb[0].mxu0
        %816 = vmatprep.mubr.bf16.mxu0 0
        %817 = vmatmul.mubr.bf16.gmra.mrb[0].mxu0 %v682
        %v818 = vpop.f32.mrb[0].mxu0
        %v819 = vadd.f32 %v710, %v818
        %v820 = vpop.f32.mrb[0].mxu0
        %v821 = vpop.f32.mrb[0].mxu0
        %v822 = vadd.f32 %v710, %v821
        %v823 = vpop.f32.mrb[0].mxu0
        %824 = vmatprep.mubr.bf16.mxu0 0
        %825 = vmatmul.mubr.bf16.gmra.mrb[0].mxu0 %v683
        %v826 = vpop.f32.mrb[0].mxu0
        %v827 = vadd.f32 %v710, %v826
        %v828 = vpop.f32.mrb[0].mxu0
        %v829 = vpop.f32.mrb[0].mxu0
        %v830 = vadd.f32 %v710, %v829
        %v831 = vpop.f32.mrb[0].mxu0
        %832 = vmatprep.mubr.bf16.mxu0 0
        %833 = vmatmul.mubr.bf16.gmra.mrb[0].mxu0 %v684
        %v834 = vpop.f32.mrb[0].mxu0
        %v835 = vadd.f32 %v710, %v834
        %v836 = vpop.f32.mrb[0].mxu0
        %v837 = vpop.f32.mrb[0].mxu0
        %v838 = vadd.f32 %v710, %v837
        %v839 = vpop.f32.mrb[0].mxu0
        %840 = vmatprep.mubr.bf16.mxu0 0
        %841 = vmatmul.mubr.bf16.gmra.mrb[0].mxu0 %v685
        %v842 = vpop.f32.mrb[0].mxu0
        %v843 = vadd.f32 %v710, %v842
        %v844 = vpop.f32.mrb[0].mxu0
        %v845 = vpop.f32.mrb[0].mxu0
        %v846 = vadd.f32 %v710, %v845
        %v847 = vpop.f32.mrb[0].mxu0
        %848 = vmatprep.mubr.bf16.mxu0 0
        %849 = vmatmul.mubr.bf16.gmra.mrb[0].mxu0 %v686
        %v850 = vpop.f32.mrb[0].mxu0
        %v851 = vadd.f32 %v710, %v850
        %v852 = vpop.f32.mrb[0].mxu0
        %v853 = vpop.f32.mrb[0].mxu0
        %v854 = vadd.f32 %v710, %v853
        %v855 = vpop.f32.mrb[0].mxu0
        %856 = vmatprep.mubr.bf16.mxu0 0
        %857 = vmatmul.mubr.bf16.gmra.mrb[0].mxu0 %v687
        %v858 = vpop.f32.mrb[0].mxu0
        %v859 = vadd.f32 %v710, %v858
        %v860 = vpop.f32.mrb[0].mxu0
        %v861 = vpop.f32.mrb[0].mxu0
        %v862 = vadd.f32 %v710, %v861
        %v863 = vpop.f32.mrb[0].mxu0
        %864 = vmatprep.mubr.bf16.mxu0 0
        %865 = vmatmul.mubr.bf16.gmra.mrb[0].mxu0 %v688
        %v866 = vpop.f32.mrb[0].mxu0
        %v867 = vadd.f32 %v710, %v866
        %v868 = vpop.f32.mrb[0].mxu0
        %v869 = vpop.f32.mrb[0].mxu0
        %v870 = vadd.f32 %v710, %v869
        %v871 = vpop.f32.mrb[0].mxu0
        %872 = vdwg.mxu0
        %p873 = scmp.gt.s32.totalorder %s37, 0
        %s874 = scalar_select %p873, 1, 0
        %s875 = scvt.s32.f32 %s874
        %p876 = scmp.lt.s32.totalorder %s37, 1
        %s877 = scalar_select %p876, 1, 0
        %s878 = scvt.s32.f32 %s877
        %v879 = vstv %s875
        %v880 = vmul.f32 %v795, %v879
        %v881 = vmul.f32 %v798, %v879
        %882 = vst [vmem:[#allocation3] sm:$0xff] %v880
        %883 = vst [vmem:[#allocation3 + $0x8] sm:$0xff] %v881
        %884 = vst [vmem:[#allocation3 + $0x10] sm:$0xff] %v803
        %885 = vst [vmem:[#allocation3 + $0x18] sm:$0xff] %v806
        %886 = vst [vmem:[#allocation3 + $0x20] sm:$0xff] %v811
        %887 = vst [vmem:[#allocation3 + $0x28] sm:$0xff] %v814
        %888 = vst [vmem:[#allocation3 + $0x30] sm:$0xff] %v819
        %889 = vst [vmem:[#allocation3 + $0x38] sm:$0xff] %v822
        %890 = vst [vmem:[#allocation3 + $0x40] sm:$0xff] %v827
        %891 = vst [vmem:[#allocation3 + $0x48] sm:$0xff] %v830
        %892 = vst [vmem:[#allocation3 + $0x50] sm:$0xff] %v835
        %893 = vst [vmem:[#allocation3 + $0x58] sm:$0xff] %v838
        %894 = vst [vmem:[#allocation3 + $0x60] sm:$0xff] %v843
        %895 = vst [vmem:[#allocation3 + $0x68] sm:$0xff] %v846
        %896 = vst [vmem:[#allocation3 + $0x70] sm:$0xff] %v851
        %897 = vst [vmem:[#allocation3 + $0x78] sm:$0xff] %v854
        %898 = vst [vmem:[#allocation3 + $0x80] sm:$0xff] %v859
        %899 = vst [vmem:[#allocation3 + $0x88] sm:$0xff] %v862
        %v900 = vstv %s878
        %v901 = vmul.f32 %v867, %v900
        %v902 = vmul.f32 %v870, %v900
        %903 = vst [vmem:[#allocation3 + $0x90] sm:$0xff] %v901
        %904 = vst [vmem:[#allocation3 + $0x98] sm:$0xff] %v902
        %v905 = vld [vmem:[%s623] sm:$0xff]
        %v906 = vld [vmem:[%s623 + $0x8] sm:$0x1]
        %v907 = vld [vmem:[%s626] sm:$0x1]
        %v908 = vld [vmem:[#allocation3] sm:$0xff]
        %v909 = vld [vmem:[#allocation3 + $0x8] sm:$0xff]
        %v910 = vld [vmem:[#allocation3 + $0x10] sm:$0xff]
        %v911 = vld [vmem:[#allocation3 + $0x18] sm:$0xff]
        %v912 = vld [vmem:[#allocation3 + $0x20] sm:$0xff]
        %v913 = vld [vmem:[#allocation3 + $0x28] sm:$0xff]
        %v914 = vld [vmem:[#allocation3 + $0x30] sm:$0xff]
        %v915 = vld [vmem:[#allocation3 + $0x38] sm:$0xff]
        %v916 = vld [vmem:[#allocation3 + $0x40] sm:$0xff]
        %v917 = vld [vmem:[#allocation3 + $0x48] sm:$0xff]
        %v918 = vld [vmem:[#allocation3 + $0x50] sm:$0xff]
        %v919 = vld [vmem:[#allocation3 + $0x58] sm:$0xff]
        %v920 = vld [vmem:[#allocation3 + $0x60] sm:$0xff]
        %v921 = vld [vmem:[#allocation3 + $0x68] sm:$0xff]
        %v922 = vld [vmem:[#allocation3 + $0x70] sm:$0xff]
        %v923 = vld [vmem:[#allocation3 + $0x78] sm:$0xff]
        %v924 = vld [vmem:[#allocation3 + $0x20] sm:$0xff]
        %v925 = vld [vmem:[#allocation3 + $0x28] sm:$0xff]
        %v926 = vld [vmem:[#allocation3 + $0x30] sm:$0xff]
        %v927 = vld [vmem:[#allocation3 + $0x38] sm:$0xff]
        %v928 = vld [vmem:[#allocation3 + $0x40] sm:$0xff]
        %v929 = vld [vmem:[#allocation3 + $0x48] sm:$0xff]
        %v930 = vld [vmem:[#allocation3 + $0x50] sm:$0xff]
        %v931 = vld [vmem:[#allocation3 + $0x58] sm:$0xff]
        %v932 = vld [vmem:[#allocation3 + $0x60] sm:$0xff]
        %v933 = vld [vmem:[#allocation3 + $0x68] sm:$0xff]
        %v934 = vld [vmem:[#allocation3 + $0x70] sm:$0xff]
        %v935 = vld [vmem:[#allocation3 + $0x78] sm:$0xff]
        %v936 = vld [vmem:[#allocation3 + $0x80] sm:$0xff]
        %v937 = vld [vmem:[#allocation3 + $0x88] sm:$0xff]
        %v938 = vld [vmem:[#allocation3 + $0x90] sm:$0xff]
        %v939 = vld [vmem:[#allocation3 + $0x98] sm:$0xff]
        %v940 = vlaneseq
        %v941 = vshrl.u32 %v940, 7
        %v942 = vsub.s32 1, %v941
        %v943 = vrot.slane %v905, %v942
        %v944 = vmul.f32 %v908, %v943
        %v945 = vmul.f32 %v909, %v943
        %v946 = vmul.f32 %v910, %v943
        %v947 = vmul.f32 %v911, %v943
        %v948 = vmul.f32 %v912, %v943
        %v949 = vmul.f32 %v913, %v943
        %v950 = vmul.f32 %v914, %v943
        %v951 = vmul.f32 %v915, %v943
        %v952 = vmul.f32 %v916, %v943
        %v953 = vmul.f32 %v917, %v943
        %v954 = vmul.f32 %v918, %v943
        %v955 = vmul.f32 %v919, %v943
        %v956 = vmul.f32 %v920, %v943
        %v957 = vmul.f32 %v921, %v943
        %v958 = vmul.f32 %v922, %v943
        %v959 = vmul.f32 %v923, %v943
        %v960 = vlaneseq
        %v961 = vshrl.u32 %v960, 7
        %v962 = vsub.s32 4, %v961
        %v963 = vrot.slane %v905, %v962
        %v964 = vmul.f32 %v803, %v963
        %v965 = vmul.f32 %v806, %v963
        %v966 = vmul.f32 %v811, %v963
        %v967 = vmul.f32 %v814, %v963
        %v968 = vmul.f32 %v819, %v963
        %v969 = vmul.f32 %v822, %v963
        %v970 = vmul.f32 %v827, %v963
        %v971 = vmul.f32 %v830, %v963
        %v972 = vmul.f32 %v835, %v963
        %v973 = vmul.f32 %v838, %v963
        %v974 = vmul.f32 %v843, %v963
        %v975 = vmul.f32 %v846, %v963
        %v976 = vmul.f32 %v851, %v963
        %v977 = vmul.f32 %v854, %v963
        %v978 = vmul.f32 %v859, %v963
        %v979 = vmul.f32 %v862, %v963
        %v980 = vadd.f32 %v944, %v964
        %v981 = vadd.f32 %v945, %v965
        %v982 = vadd.f32 %v946, %v966
        %v983 = vadd.f32 %v947, %v967
        %v984 = vadd.f32 %v948, %v968
        %v985 = vadd.f32 %v949, %v969
        %v986 = vadd.f32 %v950, %v970
        %v987 = vadd.f32 %v951, %v971
        %v988 = vadd.f32 %v952, %v972
        %v989 = vadd.f32 %v953, %v973
        %v990 = vadd.f32 %v954, %v974
        %v991 = vadd.f32 %v955, %v975
        %v992 = vadd.f32 %v956, %v976
        %v993 = vadd.f32 %v957, %v977
        %v994 = vadd.f32 %v958, %v978
        %v995 = vadd.f32 %v959, %v979
        %v996 = vlaneseq
        %v997 = vshrl.u32 %v996, 7
        %v998 = vsub.s32 7, %v997
        %v999 = vrot.slane %v905, %v998
        %v1000 = vmul.f32 %v924, %v999
        %v1001 = vmul.f32 %v925, %v999
        %v1002 = vmul.f32 %v926, %v999
        %v1003 = vmul.f32 %v927, %v999
        %v1004 = vmul.f32 %v928, %v999
        %v1005 = vmul.f32 %v929, %v999
        %v1006 = vmul.f32 %v930, %v999
        %v1007 = vmul.f32 %v931, %v999
        %v1008 = vmul.f32 %v932, %v999
        %v1009 = vmul.f32 %v933, %v999
        %v1010 = vmul.f32 %v934, %v999
        %v1011 = vmul.f32 %v935, %v999
        %v1012 = vmul.f32 %v936, %v999
        %v1013 = vmul.f32 %v937, %v999
        %v1014 = vmul.f32 %v938, %v999
        %v1015 = vmul.f32 %v939, %v999
        %v1016 = vadd.f32 %v980, %v1000
        %v1017 = vadd.f32 %v981, %v1001
        %v1018 = vadd.f32 %v982, %v1002
        %v1019 = vadd.f32 %v983, %v1003
        %v1020 = vadd.f32 %v984, %v1004
        %v1021 = vadd.f32 %v985, %v1005
        %v1022 = vadd.f32 %v986, %v1006
        %v1023 = vadd.f32 %v987, %v1007
        %v1024 = vadd.f32 %v988, %v1008
        %v1025 = vadd.f32 %v989, %v1009
        %v1026 = vadd.f32 %v990, %v1010
        %v1027 = vadd.f32 %v991, %v1011
        %v1028 = vadd.f32 %v992, %v1012
        %v1029 = vadd.f32 %v993, %v1013
        %v1030 = vadd.f32 %v994, %v1014
        %v1031 = vadd.f32 %v995, %v1015
        %v1033 = vlaneseq
        %v1034 = vshrl.u32 %v1033, 7
        %v1035 = vsub.s32 0, %v1034
        %v1036 = vrot.slane %v907, %v1035
        %v1038 = vadd.f32 %v1016, %v1036
        %v1039 = vadd.f32 %v1017, %v1036
        %v1040 = vadd.f32 %v1018, %v1036
        %v1041 = vadd.f32 %v1019, %v1036
        %v1042 = vadd.f32 %v1020, %v1036
        %v1043 = vadd.f32 %v1021, %v1036
        %v1044 = vadd.f32 %v1022, %v1036
        %v1045 = vadd.f32 %v1023, %v1036
        %v1046 = vadd.f32 %v1024, %v1036
        %v1047 = vadd.f32 %v1025, %v1036
        %v1048 = vadd.f32 %v1026, %v1036
        %v1049 = vadd.f32 %v1027, %v1036
        %v1050 = vadd.f32 %v1028, %v1036
        %v1051 = vadd.f32 %v1029, %v1036
        %v1052 = vadd.f32 %v1030, %v1036
        %v1053 = vadd.f32 %v1031, %v1036
        %v1054 = vlaneseq
        %v1055 = vshrl.u32 %v1054, 7
        %v1056 = vsub.s32 0, %v1055
        %v1057 = vrot.slane %v905, %v1056
        %v1058 = vmul.f32 %v908, %v1057
        %v1059 = vmul.f32 %v909, %v1057
        %v1060 = vmul.f32 %v910, %v1057
        %v1061 = vmul.f32 %v911, %v1057
        %v1062 = vmul.f32 %v912, %v1057
        %v1063 = vmul.f32 %v913, %v1057
        %v1064 = vmul.f32 %v914, %v1057
        %v1065 = vmul.f32 %v915, %v1057
        %v1066 = vmul.f32 %v916, %v1057
        %v1067 = vmul.f32 %v917, %v1057
        %v1068 = vmul.f32 %v918, %v1057
        %v1069 = vmul.f32 %v919, %v1057
        %v1070 = vmul.f32 %v920, %v1057
        %v1071 = vmul.f32 %v921, %v1057
        %v1072 = vmul.f32 %v922, %v1057
        %v1073 = vmul.f32 %v923, %v1057
        %v1074 = vlaneseq
        %v1075 = vshrl.u32 %v1074, 7
        %v1076 = vsub.s32 3, %v1075
        %v1077 = vrot.slane %v905, %v1076
        %v1078 = vmul.f32 %v803, %v1077
        %v1079 = vmul.f32 %v806, %v1077
        %v1080 = vmul.f32 %v811, %v1077
        %v1081 = vmul.f32 %v814, %v1077
        %v1082 = vmul.f32 %v819, %v1077
        %v1083 = vmul.f32 %v822, %v1077
        %v1084 = vmul.f32 %v827, %v1077
        %v1085 = vmul.f32 %v830, %v1077
        %v1086 = vmul.f32 %v835, %v1077
        %v1087 = vmul.f32 %v838, %v1077
        %v1088 = vmul.f32 %v843, %v1077
        %v1089 = vmul.f32 %v846, %v1077
        %v1090 = vmul.f32 %v851, %v1077
        %v1091 = vmul.f32 %v854, %v1077
        %v1092 = vmul.f32 %v859, %v1077
        %v1093 = vmul.f32 %v862, %v1077
        %v1094 = vadd.f32 %v1058, %v1078
        %v1095 = vadd.f32 %v1059, %v1079
        %v1096 = vadd.f32 %v1060, %v1080
        %v1097 = vadd.f32 %v1061, %v1081
        %v1098 = vadd.f32 %v1062, %v1082
        %v1099 = vadd.f32 %v1063, %v1083
        %v1100 = vadd.f32 %v1064, %v1084
        %v1101 = vadd.f32 %v1065, %v1085
        %v1102 = vadd.f32 %v1066, %v1086
        %v1103 = vadd.f32 %v1067, %v1087
        %v1104 = vadd.f32 %v1068, %v1088
        %v1105 = vadd.f32 %v1069, %v1089
        %v1106 = vadd.f32 %v1070, %v1090
        %v1107 = vadd.f32 %v1071, %v1091
        %v1108 = vadd.f32 %v1072, %v1092
        %v1109 = vadd.f32 %v1073, %v1093
        %v1110 = vlaneseq
        %v1111 = vshrl.u32 %v1110, 7
        %v1112 = vsub.s32 6, %v1111
        %v1113 = vrot.slane %v905, %v1112
        %v1114 = vmul.f32 %v924, %v1113
        %v1115 = vmul.f32 %v925, %v1113
        %v1116 = vmul.f32 %v926, %v1113
        %v1117 = vmul.f32 %v927, %v1113
        %v1118 = vmul.f32 %v928, %v1113
        %v1119 = vmul.f32 %v929, %v1113
        %v1120 = vmul.f32 %v930, %v1113
        %v1121 = vmul.f32 %v931, %v1113
        %v1122 = vmul.f32 %v932, %v1113
        %v1123 = vmul.f32 %v933, %v1113
        %v1124 = vmul.f32 %v934, %v1113
        %v1125 = vmul.f32 %v935, %v1113
        %v1126 = vmul.f32 %v936, %v1113
        %v1127 = vmul.f32 %v937, %v1113
        %v1128 = vmul.f32 %v938, %v1113
        %v1129 = vmul.f32 %v939, %v1113
        %v1130 = vadd.f32 %v1094, %v1114
        %v1131 = vadd.f32 %v1095, %v1115
        %v1132 = vadd.f32 %v1096, %v1116
        %v1133 = vadd.f32 %v1097, %v1117
        %v1134 = vadd.f32 %v1098, %v1118
        %v1135 = vadd.f32 %v1099, %v1119
        %v1136 = vadd.f32 %v1100, %v1120
        %v1137 = vadd.f32 %v1101, %v1121
        %v1138 = vadd.f32 %v1102, %v1122
        %v1139 = vadd.f32 %v1103, %v1123
        %v1140 = vadd.f32 %v1104, %v1124
        %v1141 = vadd.f32 %v1105, %v1125
        %v1142 = vadd.f32 %v1106, %v1126
        %v1143 = vadd.f32 %v1107, %v1127
        %v1144 = vadd.f32 %v1108, %v1128
        %v1145 = vadd.f32 %v1109, %v1129
        %v1146 = vrot.slane %v1130, 7
        %v1147 = vrot.slane %v1131, 7
        %v1148 = vrot.slane %v1132, 7
        %v1149 = vrot.slane %v1133, 7
        %v1150 = vrot.slane %v1134, 7
        %v1151 = vrot.slane %v1135, 7
        %v1152 = vrot.slane %v1136, 7
        %v1153 = vrot.slane %v1137, 7
        %v1154 = vrot.slane %v1138, 7
        %v1155 = vrot.slane %v1139, 7
        %v1156 = vrot.slane %v1140, 7
        %v1157 = vrot.slane %v1141, 7
        %v1158 = vrot.slane %v1142, 7
        %v1159 = vrot.slane %v1143, 7
        %v1160 = vrot.slane %v1144, 7
        %v1161 = vrot.slane %v1145, 7
        %v1162 = vlaneseq
        %v1163 = vshrl.u32 %v1162, 7
        %vm1164 = vcmp.lt.s32.totalorder %v1163, 1
        %v1165 = vsel %vm1164, %v1160, %v1161
        %v1166 = vsel %vm1164, %v1159, %v1160
        %v1167 = vsel %vm1164, %v1158, %v1159
        %v1168 = vsel %vm1164, %v1157, %v1158
        %v1169 = vsel %vm1164, %v1156, %v1157
        %v1170 = vsel %vm1164, %v1155, %v1156
        %v1171 = vsel %vm1164, %v1154, %v1155
        %v1172 = vsel %vm1164, %v1153, %v1154
        %v1173 = vsel %vm1164, %v1152, %v1153
        %v1174 = vsel %vm1164, %v1151, %v1152
        %v1175 = vsel %vm1164, %v1150, %v1151
        %v1176 = vsel %vm1164, %v1149, %v1150
        %v1177 = vsel %vm1164, %v1148, %v1149
        %v1178 = vsel %vm1164, %v1147, %v1148
        %v1179 = vsel %vm1164, %v1146, %v1147
        %v1180 = vsel %vm1164, %v1161, %v1146
        %v1181 = vld [vmem:[%s9] sm:$0xff]
        %v1182 = vld [vmem:[%s9 + $0x8] sm:$0xff]
        %v1183 = vld [vmem:[%s9 + $0x10] sm:$0xff]
        %v1184 = vld [vmem:[%s9 + $0x18] sm:$0xff]
        %v1185 = vld [vmem:[%s9 + $0x20] sm:$0xff]
        %v1186 = vld [vmem:[%s9 + $0x28] sm:$0xff]
        %v1187 = vld [vmem:[%s9 + $0x30] sm:$0xff]
        %v1188 = vld [vmem:[%s9 + $0x38] sm:$0xff]
        %v1189 = vld [vmem:[%s9 + $0x40] sm:$0xff]
        %v1190 = vld [vmem:[%s9 + $0x48] sm:$0xff]
        %v1191 = vld [vmem:[%s9 + $0x50] sm:$0xff]
        %v1192 = vld [vmem:[%s9 + $0x58] sm:$0xff]
        %v1193 = vld [vmem:[%s9 + $0x60] sm:$0xff]
        %v1194 = vld [vmem:[%s9 + $0x68] sm:$0xff]
        %v1195 = vld [vmem:[%s9 + $0x70] sm:$0xff]
        %v1196 = vld [vmem:[%s9 + $0x78] sm:$0xff]
        %1198 = vset.pattern.permute.xlu0 0
        %1199 = vperm.xlu0 %1198, %v1181
        %v1200 = vpop.permute.xlu0 %1199
        %1203 = vset.pattern.permute.xlu0 0
        %1204 = vperm.xlu0 %1203, %v1182
        %v1205 = vpop.permute.xlu0 %1204
        %1208 = vset.pattern.permute.xlu0 0
        %1209 = vperm.xlu0 %1208, %v1183
        %v1210 = vpop.permute.xlu0 %1209
        %1213 = vset.pattern.permute.xlu0 0
        %1214 = vperm.xlu0 %1213, %v1184
        %v1215 = vpop.permute.xlu0 %1214
        %1218 = vset.pattern.permute.xlu0 0
        %1219 = vperm.xlu0 %1218, %v1185
        %v1220 = vpop.permute.xlu0 %1219
        %1223 = vset.pattern.permute.xlu0 0
        %1224 = vperm.xlu0 %1223, %v1186
        %v1225 = vpop.permute.xlu0 %1224
        %1228 = vset.pattern.permute.xlu0 0
        %1229 = vperm.xlu0 %1228, %v1187
        %v1230 = vpop.permute.xlu0 %1229
        %1233 = vset.pattern.permute.xlu0 0
        %1234 = vperm.xlu0 %1233, %v1188
        %v1235 = vpop.permute.xlu0 %1234
        %1238 = vset.pattern.permute.xlu0 0
        %1239 = vperm.xlu0 %1238, %v1189
        %v1240 = vpop.permute.xlu0 %1239
        %1243 = vset.pattern.permute.xlu0 0
        %1244 = vperm.xlu0 %1243, %v1190
        %v1245 = vpop.permute.xlu0 %1244
        %1248 = vset.pattern.permute.xlu0 0
        %1249 = vperm.xlu0 %1248, %v1191
        %v1250 = vpop.permute.xlu0 %1249
        %1253 = vset.pattern.permute.xlu0 0
        %1254 = vperm.xlu0 %1253, %v1192
        %v1255 = vpop.permute.xlu0 %1254
        %1258 = vset.pattern.permute.xlu0 0
        %1259 = vperm.xlu0 %1258, %v1193
        %v1260 = vpop.permute.xlu0 %1259
        %1263 = vset.pattern.permute.xlu0 0
        %1264 = vperm.xlu0 %1263, %v1194
        %v1265 = vpop.permute.xlu0 %1264
        %1268 = vset.pattern.permute.xlu0 0
        %1269 = vperm.xlu0 %1268, %v1195
        %v1270 = vpop.permute.xlu0 %1269
        %1273 = vset.pattern.permute.xlu0 0
        %1274 = vperm.xlu0 %1273, %v1196
        %v1275 = vpop.permute.xlu0 %1274
        %v1277 = vmul.f32 %v1180, %v1200
        %v1278 = vmul.f32 %v1179, %v1205
        %v1279 = vmul.f32 %v1178, %v1210
        %v1280 = vmul.f32 %v1177, %v1215
        %v1281 = vmul.f32 %v1176, %v1220
        %v1282 = vmul.f32 %v1175, %v1225
        %v1283 = vmul.f32 %v1174, %v1230
        %v1284 = vmul.f32 %v1173, %v1235
        %v1285 = vmul.f32 %v1172, %v1240
        %v1286 = vmul.f32 %v1171, %v1245
        %v1287 = vmul.f32 %v1170, %v1250
        %v1288 = vmul.f32 %v1169, %v1255
        %v1289 = vmul.f32 %v1168, %v1260
        %v1290 = vmul.f32 %v1167, %v1265
        %v1291 = vmul.f32 %v1166, %v1270
        %v1292 = vmul.f32 %v1165, %v1275
        %v1293 = vadd.f32 %v1038, %v1277
        %v1294 = vadd.f32 %v1039, %v1278
        %v1295 = vadd.f32 %v1040, %v1279
        %v1296 = vadd.f32 %v1041, %v1280
        %v1297 = vadd.f32 %v1042, %v1281
        %v1298 = vadd.f32 %v1043, %v1282
        %v1299 = vadd.f32 %v1044, %v1283
        %v1300 = vadd.f32 %v1045, %v1284
        %v1301 = vadd.f32 %v1046, %v1285
        %v1302 = vadd.f32 %v1047, %v1286
        %v1303 = vadd.f32 %v1048, %v1287
        %v1304 = vadd.f32 %v1049, %v1288
        %v1305 = vadd.f32 %v1050, %v1289
        %v1306 = vadd.f32 %v1051, %v1290
        %v1307 = vadd.f32 %v1052, %v1291
        %v1308 = vadd.f32 %v1053, %v1292
        %v1309 = vlaneseq
        %v1310 = vshrl.u32 %v1309, 7
        %v1311 = vsub.s32 2, %v1310
        %v1312 = vrot.slane %v905, %v1311
        %v1313 = vmul.f32 %v908, %v1312
        %v1314 = vmul.f32 %v909, %v1312
        %v1315 = vmul.f32 %v910, %v1312
        %v1316 = vmul.f32 %v911, %v1312
        %v1317 = vmul.f32 %v912, %v1312
        %v1318 = vmul.f32 %v913, %v1312
        %v1319 = vmul.f32 %v914, %v1312
        %v1320 = vmul.f32 %v915, %v1312
        %v1321 = vmul.f32 %v916, %v1312
        %v1322 = vmul.f32 %v917, %v1312
        %v1323 = vmul.f32 %v918, %v1312
        %v1324 = vmul.f32 %v919, %v1312
        %v1325 = vmul.f32 %v920, %v1312
        %v1326 = vmul.f32 %v921, %v1312
        %v1327 = vmul.f32 %v922, %v1312
        %v1328 = vmul.f32 %v923, %v1312
        %v1329 = vlaneseq
        %v1330 = vshrl.u32 %v1329, 7
        %v1331 = vsub.s32 5, %v1330
        %v1332 = vrot.slane %v905, %v1331
        %v1333 = vmul.f32 %v803, %v1332
        %v1334 = vmul.f32 %v806, %v1332
        %v1335 = vmul.f32 %v811, %v1332
        %v1336 = vmul.f32 %v814, %v1332
        %v1337 = vmul.f32 %v819, %v1332
        %v1338 = vmul.f32 %v822, %v1332
        %v1339 = vmul.f32 %v827, %v1332
        %v1340 = vmul.f32 %v830, %v1332
        %v1341 = vmul.f32 %v835, %v1332
        %v1342 = vmul.f32 %v838, %v1332
        %v1343 = vmul.f32 %v843, %v1332
        %v1344 = vmul.f32 %v846, %v1332
        %v1345 = vmul.f32 %v851, %v1332
        %v1346 = vmul.f32 %v854, %v1332
        %v1347 = vmul.f32 %v859, %v1332
        %v1348 = vmul.f32 %v862, %v1332
        %v1349 = vadd.f32 %v1313, %v1333
        %v1350 = vadd.f32 %v1314, %v1334
        %v1351 = vadd.f32 %v1315, %v1335
        %v1352 = vadd.f32 %v1316, %v1336
        %v1353 = vadd.f32 %v1317, %v1337
        %v1354 = vadd.f32 %v1318, %v1338
        %v1355 = vadd.f32 %v1319, %v1339
        %v1356 = vadd.f32 %v1320, %v1340
        %v1357 = vadd.f32 %v1321, %v1341
        %v1358 = vadd.f32 %v1322, %v1342
        %v1359 = vadd.f32 %v1323, %v1343
        %v1360 = vadd.f32 %v1324, %v1344
        %v1361 = vadd.f32 %v1325, %v1345
        %v1362 = vadd.f32 %v1326, %v1346
        %v1363 = vadd.f32 %v1327, %v1347
        %v1364 = vadd.f32 %v1328, %v1348
        %v1365 = vlaneseq
        %v1366 = vshrl.u32 %v1365, 7
        %v1367 = vsub.s32 0, %v1366
        %v1368 = vrot.slane %v906, %v1367
        %v1369 = vmul.f32 %v924, %v1368
        %v1370 = vmul.f32 %v925, %v1368
        %v1371 = vmul.f32 %v926, %v1368
        %v1372 = vmul.f32 %v927, %v1368
        %v1373 = vmul.f32 %v928, %v1368
        %v1374 = vmul.f32 %v929, %v1368
        %v1375 = vmul.f32 %v930, %v1368
        %v1376 = vmul.f32 %v931, %v1368
        %v1377 = vmul.f32 %v932, %v1368
        %v1378 = vmul.f32 %v933, %v1368
        %v1379 = vmul.f32 %v934, %v1368
        %v1380 = vmul.f32 %v935, %v1368
        %v1381 = vmul.f32 %v936, %v1368
        %v1382 = vmul.f32 %v937, %v1368
        %v1383 = vmul.f32 %v938, %v1368
        %v1384 = vmul.f32 %v939, %v1368
        %v1385 = vadd.f32 %v1349, %v1369
        %v1386 = vadd.f32 %v1350, %v1370
        %v1387 = vadd.f32 %v1351, %v1371
        %v1388 = vadd.f32 %v1352, %v1372
        %v1389 = vadd.f32 %v1353, %v1373
        %v1390 = vadd.f32 %v1354, %v1374
        %v1391 = vadd.f32 %v1355, %v1375
        %v1392 = vadd.f32 %v1356, %v1376
        %v1393 = vadd.f32 %v1357, %v1377
        %v1394 = vadd.f32 %v1358, %v1378
        %v1395 = vadd.f32 %v1359, %v1379
        %v1396 = vadd.f32 %v1360, %v1380
        %v1397 = vadd.f32 %v1361, %v1381
        %v1398 = vadd.f32 %v1362, %v1382
        %v1399 = vadd.f32 %v1363, %v1383
        %v1400 = vadd.f32 %v1364, %v1384
        %v1401 = vrot.slane %v1385, 1
        %v1402 = vrot.slane %v1386, 1
        %v1403 = vrot.slane %v1387, 1
        %v1404 = vrot.slane %v1388, 1
        %v1405 = vrot.slane %v1389, 1
        %v1406 = vrot.slane %v1390, 1
        %v1407 = vrot.slane %v1391, 1
        %v1408 = vrot.slane %v1392, 1
        %v1409 = vrot.slane %v1393, 1
        %v1410 = vrot.slane %v1394, 1
        %v1411 = vrot.slane %v1395, 1
        %v1412 = vrot.slane %v1396, 1
        %v1413 = vrot.slane %v1397, 1
        %v1414 = vrot.slane %v1398, 1
        %v1415 = vrot.slane %v1399, 1
        %v1416 = vrot.slane %v1400, 1
        %vm1417 = vcmp.lt.s32.totalorder %v1163, 7
        %v1418 = vsel %vm1417, %v1415, %v1416
        %v1419 = vsel %vm1417, %v1414, %v1415
        %v1420 = vsel %vm1417, %v1413, %v1414
        %v1421 = vsel %vm1417, %v1412, %v1413
        %v1422 = vsel %vm1417, %v1411, %v1412
        %v1423 = vsel %vm1417, %v1410, %v1411
        %v1424 = vsel %vm1417, %v1409, %v1410
        %v1425 = vsel %vm1417, %v1408, %v1409
        %v1426 = vsel %vm1417, %v1407, %v1408
        %v1427 = vsel %vm1417, %v1406, %v1407
        %v1428 = vsel %vm1417, %v1405, %v1406
        %v1429 = vsel %vm1417, %v1404, %v1405
        %v1430 = vsel %vm1417, %v1403, %v1404
        %v1431 = vsel %vm1417, %v1402, %v1403
        %v1432 = vsel %vm1417, %v1401, %v1402
        %v1433 = vsel %vm1417, %v1416, %v1401
        %v1434 = vld [vmem:[%s10] sm:$0xff]
        %v1435 = vld [vmem:[%s10 + $0x8] sm:$0xff]
        %v1436 = vld [vmem:[%s10 + $0x10] sm:$0xff]
        %v1437 = vld [vmem:[%s10 + $0x18] sm:$0xff]
        %v1438 = vld [vmem:[%s10 + $0x20] sm:$0xff]
        %v1439 = vld [vmem:[%s10 + $0x28] sm:$0xff]
        %v1440 = vld [vmem:[%s10 + $0x30] sm:$0xff]
        %v1441 = vld [vmem:[%s10 + $0x38] sm:$0xff]
        %v1442 = vld [vmem:[%s10 + $0x40] sm:$0xff]
        %v1443 = vld [vmem:[%s10 + $0x48] sm:$0xff]
        %v1444 = vld [vmem:[%s10 + $0x50] sm:$0xff]
        %v1445 = vld [vmem:[%s10 + $0x58] sm:$0xff]
        %v1446 = vld [vmem:[%s10 + $0x60] sm:$0xff]
        %v1447 = vld [vmem:[%s10 + $0x68] sm:$0xff]
        %v1448 = vld [vmem:[%s10 + $0x70] sm:$0xff]
        %v1449 = vld [vmem:[%s10 + $0x78] sm:$0xff]
        %1451 = vset.pattern.permute.xlu0 0
        %1452 = vperm.xlu0 %1451, %v1434
        %v1453 = vpop.permute.xlu0 %1452
        %1456 = vset.pattern.permute.xlu0 0
        %1457 = vperm.xlu0 %1456, %v1435
        %v1458 = vpop.permute.xlu0 %1457
        %1461 = vset.pattern.permute.xlu0 0
        %1462 = vperm.xlu0 %1461, %v1436
        %v1463 = vpop.permute.xlu0 %1462
        %1466 = vset.pattern.permute.xlu0 0
        %1467 = vperm.xlu0 %1466, %v1437
        %v1468 = vpop.permute.xlu0 %1467
        %1471 = vset.pattern.permute.xlu0 0
        %1472 = vperm.xlu0 %1471, %v1438
        %v1473 = vpop.permute.xlu0 %1472
        %1476 = vset.pattern.permute.xlu0 0
        %1477 = vperm.xlu0 %1476, %v1439
        %v1478 = vpop.permute.xlu0 %1477
        %1481 = vset.pattern.permute.xlu0 0
        %1482 = vperm.xlu0 %1481, %v1440
        %v1483 = vpop.permute.xlu0 %1482
        %1486 = vset.pattern.permute.xlu0 0
        %1487 = vperm.xlu0 %1486, %v1441
        %v1488 = vpop.permute.xlu0 %1487
        %1491 = vset.pattern.permute.xlu0 0
        %1492 = vperm.xlu0 %1491, %v1442
        %v1493 = vpop.permute.xlu0 %1492
        %1496 = vset.pattern.permute.xlu0 0
        %1497 = vperm.xlu0 %1496, %v1443
        %v1498 = vpop.permute.xlu0 %1497
        %1501 = vset.pattern.permute.xlu0 0
        %1502 = vperm.xlu0 %1501, %v1444
        %v1503 = vpop.permute.xlu0 %1502
        %1506 = vset.pattern.permute.xlu0 0
        %1507 = vperm.xlu0 %1506, %v1445
        %v1508 = vpop.permute.xlu0 %1507
        %1511 = vset.pattern.permute.xlu0 0
        %1512 = vperm.xlu0 %1511, %v1446
        %v1513 = vpop.permute.xlu0 %1512
        %1516 = vset.pattern.permute.xlu0 0
        %1517 = vperm.xlu0 %1516, %v1447
        %v1518 = vpop.permute.xlu0 %1517
        %1521 = vset.pattern.permute.xlu0 0
        %1522 = vperm.xlu0 %1521, %v1448
        %v1523 = vpop.permute.xlu0 %1522
        %1526 = vset.pattern.permute.xlu0 0
        %1527 = vperm.xlu0 %1526, %v1449
        %v1528 = vpop.permute.xlu0 %1527
        %v1530 = vmul.f32 %v1432, %v1453
        %v1531 = vmul.f32 %v1431, %v1458
        %v1532 = vmul.f32 %v1430, %v1463
        %v1533 = vmul.f32 %v1429, %v1468
        %v1534 = vmul.f32 %v1428, %v1473
        %v1535 = vmul.f32 %v1427, %v1478
        %v1536 = vmul.f32 %v1426, %v1483
        %v1537 = vmul.f32 %v1425, %v1488
        %v1538 = vmul.f32 %v1424, %v1493
        %v1539 = vmul.f32 %v1423, %v1498
        %v1540 = vmul.f32 %v1422, %v1503
        %v1541 = vmul.f32 %v1421, %v1508
        %v1542 = vmul.f32 %v1420, %v1513
        %v1543 = vmul.f32 %v1419, %v1518
        %v1544 = vmul.f32 %v1418, %v1523
        %v1545 = vmul.f32 %v1433, %v1528
        %v1546 = vadd.f32 %v1293, %v1530
        %v1547 = vadd.f32 %v1294, %v1531
        %v1548 = vadd.f32 %v1295, %v1532
        %v1549 = vadd.f32 %v1296, %v1533
        %v1550 = vadd.f32 %v1297, %v1534
        %v1551 = vadd.f32 %v1298, %v1535
        %v1552 = vadd.f32 %v1299, %v1536
        %v1553 = vadd.f32 %v1300, %v1537
        %v1554 = vadd.f32 %v1301, %v1538
        %v1555 = vadd.f32 %v1302, %v1539
        %v1556 = vadd.f32 %v1303, %v1540
        %v1557 = vadd.f32 %v1304, %v1541
        %v1558 = vadd.f32 %v1305, %v1542
        %v1559 = vadd.f32 %v1306, %v1543
        %v1560 = vadd.f32 %v1307, %v1544
        %v1561 = vadd.f32 %v1308, %v1545
        %v1562 = vadd.f32 %v803, %v1546
        %v1563 = vadd.f32 %v806, %v1547
        %v1564 = vadd.f32 %v811, %v1548
        %v1565 = vadd.f32 %v814, %v1549
        %v1566 = vadd.f32 %v819, %v1550
        %v1567 = vadd.f32 %v822, %v1551
        %v1568 = vadd.f32 %v827, %v1552
        %v1569 = vadd.f32 %v830, %v1553
        %v1570 = vadd.f32 %v835, %v1554
        %v1571 = vadd.f32 %v838, %v1555
        %v1572 = vadd.f32 %v843, %v1556
        %v1573 = vadd.f32 %v846, %v1557
        %v1574 = vadd.f32 %v851, %v1558
        %v1575 = vadd.f32 %v854, %v1559
        %v1576 = vadd.f32 %v859, %v1560
        %v1577 = vadd.f32 %v862, %v1561
        %v1578 = vmul.f32 %v1562, %v1562
        %v1579 = vmul.f32 %v1563, %v1563
        %v1580 = vmul.f32 %v1564, %v1564
        %v1581 = vmul.f32 %v1565, %v1565
        %v1582 = vmul.f32 %v1566, %v1566
        %v1583 = vmul.f32 %v1567, %v1567
        %v1584 = vmul.f32 %v1568, %v1568
        %v1585 = vmul.f32 %v1569, %v1569
        %v1586 = vmul.f32 %v1570, %v1570
        %v1587 = vmul.f32 %v1571, %v1571
        %v1588 = vmul.f32 %v1572, %v1572
        %v1589 = vmul.f32 %v1573, %v1573
        %v1590 = vmul.f32 %v1574, %v1574
        %v1591 = vmul.f32 %v1575, %v1575
        %v1592 = vmul.f32 %v1576, %v1576
        %v1593 = vmul.f32 %v1577, %v1577
        %v1594 = vmul.f32 %v1562, %v1578
        %v1595 = vmul.f32 %v1563, %v1579
        %v1596 = vmul.f32 %v1564, %v1580
        %v1597 = vmul.f32 %v1565, %v1581
        %v1598 = vmul.f32 %v1566, %v1582
        %v1599 = vmul.f32 %v1567, %v1583
        %v1600 = vmul.f32 %v1568, %v1584
        %v1601 = vmul.f32 %v1569, %v1585
        %v1602 = vmul.f32 %v1570, %v1586
        %v1603 = vmul.f32 %v1571, %v1587
        %v1604 = vmul.f32 %v1572, %v1588
        %v1605 = vmul.f32 %v1573, %v1589
        %v1606 = vmul.f32 %v1574, %v1590
        %v1607 = vmul.f32 %v1575, %v1591
        %v1608 = vmul.f32 %v1576, %v1592
        %v1609 = vmul.f32 %v1577, %v1593
        %v1610 = vmul.f32 %v1594, 0.044715
        %v1611 = vmul.f32 %v1595, 0.044715
        %v1612 = vmul.f32 %v1596, 0.044715
        %v1613 = vmul.f32 %v1597, 0.044715
        %v1614 = vmul.f32 %v1598, 0.044715
        %v1615 = vmul.f32 %v1599, 0.044715
        %v1616 = vmul.f32 %v1600, 0.044715
        %v1617 = vmul.f32 %v1601, 0.044715
        %v1618 = vmul.f32 %v1602, 0.044715
        %v1619 = vmul.f32 %v1603, 0.044715
        %v1620 = vmul.f32 %v1604, 0.044715
        %v1621 = vmul.f32 %v1605, 0.044715
        %v1622 = vmul.f32 %v1606, 0.044715
        %v1623 = vmul.f32 %v1607, 0.044715
        %v1624 = vmul.f32 %v1608, 0.044715
        %v1625 = vmul.f32 %v1609, 0.044715
        %v1626 = vadd.f32 %v1562, %v1610
        %v1627 = vadd.f32 %v1563, %v1611
        %v1628 = vadd.f32 %v1564, %v1612
        %v1629 = vadd.f32 %v1565, %v1613
        %v1630 = vadd.f32 %v1566, %v1614
        %v1631 = vadd.f32 %v1567, %v1615
        %v1632 = vadd.f32 %v1568, %v1616
        %v1633 = vadd.f32 %v1569, %v1617
        %v1634 = vadd.f32 %v1570, %v1618
        %v1635 = vadd.f32 %v1571, %v1619
        %v1636 = vadd.f32 %v1572, %v1620
        %v1637 = vadd.f32 %v1573, %v1621
        %v1638 = vadd.f32 %v1574, %v1622
        %v1639 = vadd.f32 %v1575, %v1623
        %v1640 = vadd.f32 %v1576, %v1624
        %v1641 = vadd.f32 %v1577, %v1625
        %v1642 = vmul.f32 %v1626, 0.7978846
        %v1643 = vmul.f32 %v1627, 0.7978846
        %v1644 = vmul.f32 %v1628, 0.7978846
        %v1645 = vmul.f32 %v1629, 0.7978846
        %v1646 = vmul.f32 %v1630, 0.7978846
        %v1647 = vmul.f32 %v1631, 0.7978846
        %v1648 = vmul.f32 %v1632, 0.7978846
        %v1649 = vmul.f32 %v1633, 0.7978846
        %v1650 = vmul.f32 %v1634, 0.7978846
        %v1651 = vmul.f32 %v1635, 0.7978846
        %v1652 = vmul.f32 %v1636, 0.7978846
        %v1653 = vmul.f32 %v1637, 0.7978846
        %v1654 = vmul.f32 %v1638, 0.7978846
        %v1655 = vmul.f32 %v1639, 0.7978846
        %v1656 = vmul.f32 %v1640, 0.7978846
        %v1657 = vmul.f32 %v1641, 0.7978846
        %v1658 = vtanh.pop %v1642
        %v1659 = vtanh.pop %v1643
        %v1660 = vtanh.pop %v1644
        %v1661 = vtanh.pop %v1645
        %v1662 = vtanh.pop %v1646
        %v1663 = vtanh.pop %v1647
        %v1664 = vtanh.pop %v1648
        %v1665 = vtanh.pop %v1649
        %v1666 = vtanh.pop %v1650
        %v1667 = vtanh.pop %v1651
        %v1668 = vtanh.pop %v1652
        %v1669 = vtanh.pop %v1653
        %v1670 = vtanh.pop %v1654
        %v1671 = vtanh.pop %v1655
        %v1672 = vtanh.pop %v1656
        %v1673 = vtanh.pop %v1657
        %v1674 = vadd.f32 %v1658, 1.0
        %v1675 = vadd.f32 %v1659, 1.0
        %v1676 = vadd.f32 %v1660, 1.0
        %v1677 = vadd.f32 %v1661, 1.0
        %v1678 = vadd.f32 %v1662, 1.0
        %v1679 = vadd.f32 %v1663, 1.0
        %v1680 = vadd.f32 %v1664, 1.0
        %v1681 = vadd.f32 %v1665, 1.0
        %v1682 = vadd.f32 %v1666, 1.0
        %v1683 = vadd.f32 %v1667, 1.0
        %v1684 = vadd.f32 %v1668, 1.0
        %v1685 = vadd.f32 %v1669, 1.0
        %v1686 = vadd.f32 %v1670, 1.0
        %v1687 = vadd.f32 %v1671, 1.0
        %v1688 = vadd.f32 %v1672, 1.0
        %v1689 = vadd.f32 %v1673, 1.0
        %v1690 = vmul.f32 %v1674, 0.5
        %v1691 = vmul.f32 %v1675, 0.5
        %v1692 = vmul.f32 %v1676, 0.5
        %v1693 = vmul.f32 %v1677, 0.5
        %v1694 = vmul.f32 %v1678, 0.5
        %v1695 = vmul.f32 %v1679, 0.5
        %v1696 = vmul.f32 %v1680, 0.5
        %v1697 = vmul.f32 %v1681, 0.5
        %v1698 = vmul.f32 %v1682, 0.5
        %v1699 = vmul.f32 %v1683, 0.5
        %v1700 = vmul.f32 %v1684, 0.5
        %v1701 = vmul.f32 %v1685, 0.5
        %v1702 = vmul.f32 %v1686, 0.5
        %v1703 = vmul.f32 %v1687, 0.5
        %v1704 = vmul.f32 %v1688, 0.5
        %v1705 = vmul.f32 %v1689, 0.5
        %v1706 = vmul.f32 %v1562, %v1690
        %v1707 = vmul.f32 %v1563, %v1691
        %v1708 = vmul.f32 %v1564, %v1692
        %v1709 = vmul.f32 %v1565, %v1693
        %v1710 = vmul.f32 %v1566, %v1694
        %v1711 = vmul.f32 %v1567, %v1695
        %v1712 = vmul.f32 %v1568, %v1696
        %v1713 = vmul.f32 %v1569, %v1697
        %v1714 = vmul.f32 %v1570, %v1698
        %v1715 = vmul.f32 %v1571, %v1699
        %v1716 = vmul.f32 %v1572, %v1700
        %v1717 = vmul.f32 %v1573, %v1701
        %v1718 = vmul.f32 %v1574, %v1702
        %v1719 = vmul.f32 %v1575, %v1703
        %v1720 = vmul.f32 %v1576, %v1704
        %v1721 = vmul.f32 %v1577, %v1705
        %v1722 = vpack.c.bf16 %v1707, %v1706
        %v1723 = vpack.c.bf16 %v1709, %v1708
        %v1724 = vpack.c.bf16 %v1711, %v1710
        %v1725 = vpack.c.bf16 %v1713, %v1712
        %v1726 = vpack.c.bf16 %v1715, %v1714
        %v1727 = vpack.c.bf16 %v1717, %v1716
        %v1728 = vpack.c.bf16 %v1719, %v1718
        %v1729 = vpack.c.bf16 %v1721, %v1720
        %v1730 = vld [vmem:[%s631] sm:$0xf]
        %v1731 = vld [vmem:[%s631 + $0x4] sm:$0xf]
        %v1732 = vld [vmem:[%s631 + $0x8] sm:$0xf]
        %v1733 = vld [vmem:[%s631 + $0xc] sm:$0xf]
        %v1734 = vld [vmem:[%s631 + $0x10] sm:$0xf]
        %v1735 = vld [vmem:[%s631 + $0x14] sm:$0xf]
        %v1736 = vld [vmem:[%s631 + $0x18] sm:$0xf]
        %v1737 = vld [vmem:[%s631 + $0x1c] sm:$0xf]
        %v1738 = vld [vmem:[%s631 + $0x20] sm:$0xf]
        %v1739 = vld [vmem:[%s631 + $0x24] sm:$0xf]
        %v1740 = vld [vmem:[%s631 + $0x28] sm:$0xf]
        %v1741 = vld [vmem:[%s631 + $0x2c] sm:$0xf]
        %v1742 = vld [vmem:[%s631 + $0x30] sm:$0xf]
        %v1743 = vld [vmem:[%s631 + $0x34] sm:$0xf]
        %v1744 = vld [vmem:[%s631 + $0x38] sm:$0xf]
        %v1745 = vld [vmem:[%s631 + $0x3c] sm:$0xf]
        %v1746 = vld [vmem:[%s8] sm:$0x1]
        %v1748 = vlaneseq
        %v1749 = vshrl.u32 %v1748, 7
        %v1750 = vsub.s32 0, %v1749
        %v1751 = vrot.slane %v1746, %v1750
        %v1769 = vunpack.c.l.b16 %v1730
        %v1770 = vunpack.c.l.b16 %v1731
        %v1771 = vunpack.c.l.b16 %v1732
        %v1772 = vunpack.c.l.b16 %v1733
        %v1773 = vunpack.c.l.b16 %v1734
        %v1774 = vunpack.c.l.b16 %v1735
        %v1775 = vunpack.c.l.b16 %v1736
        %v1776 = vunpack.c.l.b16 %v1737
        %v1777 = vunpack.c.l.b16 %v1738
        %v1778 = vunpack.c.l.b16 %v1739
        %v1779 = vunpack.c.l.b16 %v1740
        %v1780 = vunpack.c.l.b16 %v1741
        %v1781 = vunpack.c.l.b16 %v1742
        %v1782 = vunpack.c.l.b16 %v1743
        %v1783 = vunpack.c.l.b16 %v1744
        %v1784 = vunpack.c.l.b16 %v1745
        %v1785 = vpack.c.b16 %v1770, %v1769
        %v1786 = vpack.c.b16 %v1772, %v1771
        %v1787 = vpack.c.b16 %v1774, %v1773
        %v1788 = vpack.c.b16 %v1776, %v1775
        %v1789 = vpack.c.b16 %v1778, %v1777
        %v1790 = vpack.c.b16 %v1780, %v1779
        %v1791 = vpack.c.b16 %v1782, %v1781
        %v1792 = vpack.c.b16 %v1784, %v1783
        %1801 = vmatprep.subr.bf16.mxu0 0
        %1802 = vmatpush1.bf16.msra.mxu0 %v1785
        %1803 = vmatprep.subr.bf16.mxu0 0
        %1804 = vmatpush1.bf16.msra.mxu0 %v1786
        %1805 = vmatprep.subr.bf16.mxu0 0
        %1806 = vmatpush1.bf16.msra.mxu0 %v1787
        %1807 = vmatprep.subr.bf16.mxu0 0
        %1808 = vmatpush1.bf16.msra.mxu0 %v1788
        %1809 = vmatprep.subr.bf16.mxu0 0
        %1810 = vmatpush1.bf16.msra.mxu0 %v1789
        %1811 = vmatprep.subr.bf16.mxu0 0
        %1812 = vmatpush1.bf16.msra.mxu0 %v1790
        %1813 = vmatprep.subr.bf16.mxu0 0
        %1814 = vmatpush1.bf16.msra.mxu0 %v1791
        %1815 = vmatprep.subr.bf16.mxu0 0
        %1816 = vmatpush1.bf16.msra.mxu0 %v1792
        %1817 = vmatprep.subr.bf16.mxu0 0
        %1818 = vmatpush1.bf16.msra.mxu0 0
        %1819 = vmatprep.subr.bf16.mxu0 0
        %1820 = vmatpush1.bf16.msra.mxu0 0
        %1821 = vmatprep.subr.bf16.mxu0 0
        %1822 = vmatpush1.bf16.msra.mxu0 0
        %1823 = vmatprep.subr.bf16.mxu0 0
        %1824 = vmatpush1.bf16.msra.mxu0 0
        %1825 = vmatprep.subr.bf16.mxu0 0
        %1826 = vmatpush1.bf16.msra.mxu0 0
        %1827 = vmatprep.subr.bf16.mxu0 0
        %1828 = vmatpush1.bf16.msra.mxu0 0
        %1829 = vmatprep.subr.bf16.mxu0 0
        %1830 = vmatpush1.bf16.msra.mxu0 0
        %1831 = vmatprep.subr.bf16.mxu0 0
        %1832 = vmatpush1.bf16.msra.mxu0 0
        %1833 = vmatprep.mubr.bf16.mxu0 0
        %1834 = vmatmul.mubr.bf16.gmra.mrb[0].mxu0 %v1722
        %v1835 = vpop.f32.mrb[0].mxu0
        %v1836 = vadd.f32 %v1751, %v1835
        %v1837 = vpop.f32.mrb[0].mxu0
        %v1838 = vpop.f32.mrb[0].mxu0
        %v1839 = vadd.f32 %v1751, %v1838
        %v1840 = vpop.f32.mrb[0].mxu0
        %1841 = vmatprep.mubr.bf16.mxu0 0
        %1842 = vmatmul.mubr.bf16.gmra.mrb[0].mxu0 %v1723
        %v1843 = vpop.f32.mrb[0].mxu0
        %v1844 = vadd.f32 %v1751, %v1843
        %v1845 = vpop.f32.mrb[0].mxu0
        %v1846 = vpop.f32.mrb[0].mxu0
        %v1847 = vadd.f32 %v1751, %v1846
        %v1848 = vpop.f32.mrb[0].mxu0
        %1849 = vmatprep.mubr.bf16.mxu0 0
        %1850 = vmatmul.mubr.bf16.gmra.mrb[0].mxu0 %v1724
        %v1851 = vpop.f32.mrb[0].mxu0
        %v1852 = vadd.f32 %v1751, %v1851
        %v1853 = vpop.f32.mrb[0].mxu0
        %v1854 = vpop.f32.mrb[0].mxu0
        %v1855 = vadd.f32 %v1751, %v1854
        %v1856 = vpop.f32.mrb[0].mxu0
        %1857 = vmatprep.mubr.bf16.mxu0 0
        %1858 = vmatmul.mubr.bf16.gmra.mrb[0].mxu0 %v1725
        %v1859 = vpop.f32.mrb[0].mxu0
        %v1860 = vadd.f32 %v1751, %v1859
        %v1861 = vpop.f32.mrb[0].mxu0
        %v1862 = vpop.f32.mrb[0].mxu0
        %v1863 = vadd.f32 %v1751, %v1862
        %v1864 = vpop.f32.mrb[0].mxu0
        %1865 = vmatprep.mubr.bf16.mxu0 0
        %1866 = vmatmul.mubr.bf16.gmra.mrb[0].mxu0 %v1726
        %v1867 = vpop.f32.mrb[0].mxu0
        %v1868 = vadd.f32 %v1751, %v1867
        %v1869 = vpop.f32.mrb[0].mxu0
        %v1870 = vpop.f32.mrb[0].mxu0
        %v1871 = vadd.f32 %v1751, %v1870
        %v1872 = vpop.f32.mrb[0].mxu0
        %1873 = vmatprep.mubr.bf16.mxu0 0
        %1874 = vmatmul.mubr.bf16.gmra.mrb[0].mxu0 %v1727
        %v1875 = vpop.f32.mrb[0].mxu0
        %v1876 = vadd.f32 %v1751, %v1875
        %v1877 = vpop.f32.mrb[0].mxu0
        %v1878 = vpop.f32.mrb[0].mxu0
        %v1879 = vadd.f32 %v1751, %v1878
        %v1880 = vpop.f32.mrb[0].mxu0
        %1881 = vmatprep.mubr.bf16.mxu0 0
        %1882 = vmatmul.mubr.bf16.gmra.mrb[0].mxu0 %v1728
        %v1883 = vpop.f32.mrb[0].mxu0
        %v1884 = vadd.f32 %v1751, %v1883
        %v1885 = vpop.f32.mrb[0].mxu0
        %v1886 = vpop.f32.mrb[0].mxu0
        %v1887 = vadd.f32 %v1751, %v1886
        %v1888 = vpop.f32.mrb[0].mxu0
        %1889 = vmatprep.mubr.bf16.mxu0 0
        %1890 = vmatmul.mubr.bf16.gmra.mrb[0].mxu0 %v1729
        %v1891 = vpop.f32.mrb[0].mxu0
        %v1892 = vadd.f32 %v1751, %v1891
        %v1893 = vpop.f32.mrb[0].mxu0
        %v1894 = vpop.f32.mrb[0].mxu0
        %v1895 = vadd.f32 %v1751, %v1894
        %v1896 = vpop.f32.mrb[0].mxu0
        %1897 = vdwg.mxu0
        %1898 = vst [vmem:[%s603] sm:$0xff] %v1836
        %1899 = vst [vmem:[%s603 + $0x8] sm:$0xff] %v1839
        %1900 = vst [vmem:[%s603 + $0x10] sm:$0xff] %v1844
        %1901 = vst [vmem:[%s603 + $0x18] sm:$0xff] %v1847
        %1902 = vst [vmem:[%s603 + $0x20] sm:$0xff] %v1852
        %1903 = vst [vmem:[%s603 + $0x28] sm:$0xff] %v1855
        %1904 = vst [vmem:[%s603 + $0x30] sm:$0xff] %v1860
        %1905 = vst [vmem:[%s603 + $0x38] sm:$0xff] %v1863
        %1906 = vst [vmem:[%s603 + $0x40] sm:$0xff] %v1868
        %1907 = vst [vmem:[%s603 + $0x48] sm:$0xff] %v1871
        %1908 = vst [vmem:[%s603 + $0x50] sm:$0xff] %v1876
        %1909 = vst [vmem:[%s603 + $0x58] sm:$0xff] %v1879
        %1910 = vst [vmem:[%s603 + $0x60] sm:$0xff] %v1884
        %1911 = vst [vmem:[%s603 + $0x68] sm:$0xff] %v1887
        %1912 = vst [vmem:[%s603 + $0x70] sm:$0xff] %v1892
        %1913 = vst [vmem:[%s603 + $0x78] sm:$0xff] %v1895
        %s1914 = sand.u32 %s353, 1
        %s1915 = scalar_lea.sflag [#allocation7], %s1914
        %s1916 = sand.u32 %s353, 1
        %s1917 = smul.addr %s1916, 128
        %s1918 = scalar_lea.vmem [#allocation11], %s1917
        // Predicated region
        $region81: #{tpu_custom_call.1} parent=63 // pred_check
          %p1919 = pneg %p363
        $region82: #{tpu_custom_call.1} parent=63 // pred_check_branch
          %1921 = sbr.rel (%p1919) target = $region84
        $region83: #{tpu_custom_call.1} parent=63 // pred_region
          %s1922 = smul.u32 8, %s37
          %s1924 = ssub.s32 2048, 2048
          %1925 = vsyncadd %s1915, %s1924
          %s1926 = smul.addr %s1922, 2
          %s1927 = smul.addr %s36, 32
          %s1928 = sadd.s32 %s1926, %s1927
          %s1929 = smul.addr %s1928, 128
          %s1930 = scalar_lea.hbm %s11, %s1929
          %s1931 = sshll.u32 %s1918, 4
          %s1932 = int_to_ptr.vmem [resolvable:$true] %s1931
          %1937 = dma.vmem_to_hbm [thread:$0]  %s1932, 2048, %s1930, %s1915, 128, 128, 8
        $region84: #{tpu_custom_call.1} parent=63 // pred_fallthru
          _
      $region64: #{tpu_custom_call.1} parent=5 // pred_fallthru
        _
      %p1938 = scmp.le.s32.totalorder 2, %s26
      // Predicated region
      $region85: #{tpu_custom_call.1} parent=5 // pred_check
        %p1939 = pneg %p1938
      $region86: #{tpu_custom_call.1} parent=5 // pred_check_branch
        %1941 = sbr.rel (%p1939) target = $region88
      $region87: #{tpu_custom_call.1} parent=5 // pred_region
        %s1942 = ssub.s32 %s26, 2
        // Predicated region
        $region89: #{tpu_custom_call.1} parent=87 // pred_check
          %p1943 = pneg %p369
        $region90: #{tpu_custom_call.1} parent=87 // pred_check_branch
          %1945 = sbr.rel (%p1943) target = $region92
        $region91: #{tpu_custom_call.1} parent=87 // pred_region
          %s1946 = sand.u32 %s354, 1
          %s1947 = scalar_lea.sflag [#allocation7], %s1946
          %s1948 = sand.u32 %s354, 1
          %s1949 = smul.addr %s1948, 128
          %s1950 = scalar_lea.vmem [#allocation11], %s1949
          %1951 = dma.done %s1947, 2048
        $region92: #{tpu_custom_call.1} parent=87 // pred_fallthru
          _
      $region88: #{tpu_custom_call.1} parent=5 // pred_fallthru
        _
    $region6: #{tpu_custom_call.1} parent=1 // loop_footer
      %s30 = sadd.s32 1, %s26
    $region7: #{tpu_custom_call.1} parent=1 // loop_footer_branch
      %25 = sbr.rel target = $region3
    $region8: #{tpu_custom_call.1} parent=1 // loop_exit
      _
    %1952 = vsyncpa [#allocation6], 1
    %s1953 = scalar_lea.sflag [#allocation6], 1
    %1954 = vsyncpa %s1953, 1
    %1955 = vsyncpa [#allocation9], 1
    %s1956 = scalar_lea.sflag [#allocation9], 1
    %1957 = vsyncpa %s1956, 1
    %1958 = vsyncpa [#allocation7], 1
    %s1959 = scalar_lea.sflag [#allocation7], 1
    %1960 = vsyncpa %s1959, 1

</llo_original>
